<compile_context>
chip_gen: v7x
topology: tpu7x:2x2x1
jax: 0.10.0
libtpu: 0.0.40
codegen_flags: <defaults>
</compile_context>

<pallas_src>
import functools

import jax
import jax.numpy as jnp
from jax import lax
from jax.experimental import pallas as pl
from jax.experimental.pallas import tpu as pltpu


def _round_up(x, m):
    return (x + m - 1) // m * m


def _cdiv(a, b):
    return -(-a // b)


# -----------------------------------------------------------------------------
# Kernel
# -----------------------------------------------------------------------------
def _highway_kernel(num_layers, d_out, mask_pad,
                    x_ref,              # (TN, Dip)        f32, streamed batch tile
                    w1_ref, b1_ref,     # (Dip, Hp) bf16, (1, Hp) f32
                    wf_ref, bf_ref,     # (L, Hp, 3Hp) bf16, (L, 1, 3Hp) f32  [gate|h|x]
                    wl_ref, bl_ref,     # (Hp, Dp) bf16, (1, Dp) f32
                    o_ref):             # (TN, Dp)         f32
    hp = w1_ref.shape[1]

    # Input projection + ReLU (bf16 MXU operands, f32 accumulation).
    x = x_ref[...].astype(jnp.bfloat16)
    h = jnp.dot(x, w1_ref[...], preferred_element_type=jnp.float32) + b1_ref[...]
    h = jnp.maximum(h, 0.0)

    # Highway layers: one fused (TN,Hp)@(Hp,3Hp) MXU matmul per layer, lanes
    # sliced into [gate | nonlinear | linear] (Hp is a multiple of 128 so the
    # slices are lane-aligned).
    def layer(l, h):
        z = jnp.dot(h.astype(jnp.bfloat16), wf_ref[l],
                    preferred_element_type=jnp.float32) + bf_ref[l]
        gate = jax.nn.sigmoid(z[:, :hp])
        nonlinear = jnp.maximum(z[:, hp:2 * hp], 0.0)
        linear = z[:, 2 * hp:]
        return linear + gate * (nonlinear - linear)          # == g*n + (1-g)*l

    # fori_loop bounds live ranges for deep stacks; fully unroll short loops.
    h = lax.fori_loop(0, num_layers, layer, h, unroll=num_layers <= 4)

    # Output projection + softmax over the (un-padded) feature lanes.
    logits = jnp.dot(h.astype(jnp.bfloat16), wl_ref[...],
                     preferred_element_type=jnp.float32) + bl_ref[...]
    if mask_pad:                                             # static Python bool
        lane = lax.broadcasted_iota(jnp.int32, logits.shape, 1)
        logits = jnp.where(lane < d_out, logits, -1e30)
    logits = logits - jnp.max(logits, axis=-1, keepdims=True)
    e = jnp.exp(logits)
    inv_den = pl.reciprocal(jnp.sum(e, axis=-1, keepdims=True), approx=True)
    o_ref[...] = (e * inv_den).astype(o_ref.dtype)           # single dense store


# -----------------------------------------------------------------------------
# Packing / budgeting helpers
# -----------------------------------------------------------------------------
def _pack_params(params, num_layers):
    """Pad to lane-aligned sizes, fuse the 3 highway weight sets -> (L,Hp,3Hp),
    and store matmul weights in bf16 (biases stay f32)."""
    D_in, H = params["w1"].shape
    D_out = params["wl"].shape[1]
    Dip = _round_up(D_in, 128)
    Hp = _round_up(H, 128)
    Dp = _round_up(D_out, 128)

    f32, bf16 = jnp.float32, jnp.bfloat16

    # Padded regions are exactly zero by construction (and zero casts to bf16
    # zero exactly), so padded hidden lanes stay exactly 0 through every layer.
    w1 = jnp.zeros((Dip, Hp), f32).at[:D_in, :H].set(params["w1"]).astype(bf16)
    b1 = jnp.zeros((1, Hp), f32).at[:, :H].set(params["b1"])

    def pad_w(w):   # (L, H, H) -> (L, Hp, Hp)
        return jnp.zeros((num_layers, Hp, Hp), f32).at[:, :H, :H].set(w)

    def pad_b(b):   # (L, 1, H) -> (L, 1, Hp)
        return jnp.zeros((num_layers, 1, Hp), f32).at[:, :, :H].set(b)

    # Fused order: [ gate | nonlinear(h) | linear(x) ] along the output dim.
    wf = jnp.concatenate(
        [pad_w(params["wg"]), pad_w(params["wh"]), pad_w(params["wx"])], axis=2
    ).astype(bf16)
    bf = jnp.concatenate(
        [pad_b(params["bg"]), pad_b(params["bh"]), pad_b(params["bx"])], axis=2)

    wl = jnp.zeros((Hp, Dp), f32).at[:H, :D_out].set(params["wl"]).astype(bf16)
    bl = jnp.zeros((1, Dp), f32).at[:, :D_out].set(params["bl"])

    packed = dict(w1=w1, b1=b1, wf=wf, bf=bf, wl=wl, bl=bl)
    return packed, Dip, Hp, Dp, D_out


def _vmem_capacity_bytes():
    try:
        return int(pltpu.get_tpu_info().vmem_capacity_bytes)
    except Exception:
        return 64 << 20          # conservative (v7x per-core VMEM)


def _footprint_bytes(tn, d_inp, hp, dp, weight_bytes):
    stream = 2 * tn * d_inp * 4 + 2 * tn * dp * 4   # double-buffered x / out tiles
    temps = 2 * tn * (4 * hp + dp) * 4              # h, fused z, softmax temporaries
    return weight_bytes + stream + temps + (4 << 20)  # + compiler headroom


def _make_specs(packed, tn, d_inp, dp, single_buffer_weights):
    wkw = dict(pipeline_mode=pl.Buffered(1)) if single_buffer_weights else {}

    def const_spec(a):
        # Full-extent block, constant across the batch grid (weights stay VMEM
        # resident). ndim bound via default arg (no late-binding closure bug).
        return pl.BlockSpec(a.shape, lambda i, _nd=a.ndim: (0,) * _nd, **wkw)

    in_specs = [
        pl.BlockSpec((tn, d_inp), lambda i: (i, 0)),      # x streamed per tile
        const_spec(packed["w1"]), const_spec(packed["b1"]),
        const_spec(packed["wf"]), const_spec(packed["bf"]),
        const_spec(packed["wl"]), const_spec(packed["bl"]),
    ]
    out_spec = pl.BlockSpec((tn, dp), lambda i: (i, 0))   # lane-dense (Dp = 128k)
    return in_specs, out_spec


# -----------------------------------------------------------------------------
# Wrapper
# -----------------------------------------------------------------------------
def highway_forward(x, params, num_layers):
    """x: (N, D_in) float32. params: dict of (in, out)-layout weights/biases."""
    N, D_in = x.shape
    packed, Dip, Hp, Dp, D_out = _pack_params(params, num_layers)
    weight_bytes = sum(int(v.size) * v.dtype.itemsize for v in packed.values())

    vmem_cap = _vmem_capacity_bytes()
    budget = int(vmem_cap * 0.75)
    row_cap = 1024 if budget >= (96 << 20) else 512       # big tiles on v5e/v6e

    # Batch tiling: lane/sublane-aligned; aim for >=2 tiles when N >= 16 so the
    # "parallel" grid axis can shard across both v7x TensorCores.
    if N >= 16:
        tn = min(row_cap, _round_up(_cdiv(N, 2), 8))
    else:
        tn = _round_up(max(N, 8), 8)
    while tn > 8 and _footprint_bytes(tn, Dip, Hp, Dp, weight_bytes) > budget:
        tn = max(8, _round_up(tn // 2, 8))
    # TODO(synk): if the bf16 fused weight stack alone exceeds the VMEM budget
    # (very large H * num_layers), switch wf/bf to memory_space=pl.ANY and
    # manually double-buffer per-layer weight DMA inside the kernel.

    Np = _round_up(N, tn)
    xp = jnp.zeros((Np, Dip), jnp.float32).at[:N, :D_in].set(x.astype(jnp.float32))
    grid = (Np // tn,)

    cost = pl.CostEstimate(
        flops=2 * Np * (Dip * Hp + num_layers * Hp * 3 * Hp + Hp * Dp),
        transcendentals=Np * (num_layers * Hp + Dp),
        bytes_accessed=weight_bytes + Np * (Dip + Dp) * 4,
    )

    kernel = functools.partial(_highway_kernel, num_layers, D_out, Dp != D_out)
    args = (xp, packed["w1"], packed["b1"], packed["wf"], packed["bf"],
            packed["wl"], packed["bl"])

    def run(single_buffer_weights):
        wb = weight_bytes if single_buffer_weights else 2 * weight_bytes
        foot = _footprint_bytes(tn, Dip, Hp, Dp, wb)
        vmem_limit = int(min(max(foot, 32 << 20), int(vmem_cap * 0.9)))
        in_specs, out_spec = _make_specs(packed, tn, Dip, Dp, single_buffer_weights)
        return pl.pallas_call(
            kernel,
            grid=grid,
            in_specs=in_specs,
            out_specs=out_spec,
            out_shape=jax.ShapeDtypeStruct((Np, Dp), jnp.float32),
            compiler_params=pltpu.CompilerParams(
                dimension_semantics=("parallel",),
                vmem_limit_bytes=vmem_limit,
            ),
            cost_estimate=cost,
        )(*args)

    try:
        out = run(single_buffer_weights=True)
    except Exception:
        # pl.Buffered(1) support varies across JAX versions; the default
        # (double-buffered) path is identical in results, just uses more VMEM.
        out = run(single_buffer_weights=False)

    return out[:N, :D_out]


# -----------------------------------------------------------------------------
# Parameters & plain-JAX reference (mirrors the PyTorch module)
# -----------------------------------------------------------------------------
def init_params(key, D_in, H, D_out, num_layers):
    """Deterministic synthetic parameters. Weights stored as (in, out)."""
    ks = jax.random.split(key, 8)
    scale = 0.1

    def w(k, shape):
        return scale * jax.random.normal(k, shape, dtype=jnp.float32)

    params = {
        "w1": w(ks[0], (D_in, H)),
        "b1": w(ks[1], (1, H)),
        "wh": w(ks[2], (num_layers, H, H)),
        "bh": w(ks[3], (num_layers, 1, H)),
        "wx": w(ks[4], (num_layers, H, H)),
        "bx": w(ks[5], (num_layers, 1, H)),
        # Bias the gates slightly negative like the Highway paper suggests.
        "wg": w(ks[6], (num_layers, H, H)),
        "bg": w(ks[7], (num_layers, 1, H)) - 1.0,
    }
    kl1, kl2 = jax.random.split(jax.random.fold_in(key, 99))
    params["wl"] = w(kl1, (H, D_out))
    params["bl"] = w(kl2, (1, D_out))
    return params


def reference_forward(x, params, num_layers):
    h = jnp.maximum(x @ params["w1"] + params["b1"], 0.0)
    for l in range(num_layers):
        gate = jax.nn.sigmoid(h @ params["wg"][l] + params["bg"][l])
        nonlinear = jnp.maximum(h @ params["wh"][l] + params["bh"][l], 0.0)
        linear = h @ params["wx"][l] + params["bx"][l]
        h = gate * nonlinear + (1.0 - gate) * linear
    logits = h @ params["wl"] + params["bl"]
    return jax.nn.softmax(logits, axis=1)


if __name__ == "__main__":
    N, D_in, H, D_out, num_layers = 8, 16, 32, 10, 3

    key = jax.random.PRNGKey(0)
    k_x, k_p = jax.random.split(key)
    x = jax.random.normal(k_x, (N, D_in), dtype=jnp.float32)
    params = init_params(k_p, D_in, H, D_out, num_layers)

    y = highway_forward(x, params, num_layers)
    y = jax.block_until_ready(y)

    y_ref = reference_forward(x, params, num_layers)
    assert y.shape == (N, D_out)
    # Tolerance accounts for bf16 MXU operands + approx (EUP) softmax reciprocal.
    assert jnp.allclose(y, y_ref, atol=1e-2, rtol=1e-2), "mismatch vs reference"
    assert jnp.allclose(jnp.sum(y, axis=1), 1.0, atol=5e-3), "rows not normalized"

    print("KERNEL_OK")
</pallas_src>

<mosaic_0001>
module attributes {stable_mosaic.version = 11 : i64} {
  func.func @_highway_kernel(%arg0: i32, %arg1: memref<8x128xf32, #tpu.memory_space<vmem>>, %arg2: memref<128x128xbf16, #tpu.memory_space<vmem>>, %arg3: memref<1x128xf32, #tpu.memory_space<vmem>>, %arg4: memref<3x128x384xbf16, #tpu.memory_space<vmem>>, %arg5: memref<3x1x384xf32, #tpu.memory_space<vmem>>, %arg6: memref<128x128xbf16, #tpu.memory_space<vmem>>, %arg7: memref<1x128xf32, #tpu.memory_space<vmem>>, %arg8: memref<8x128xf32, #tpu.memory_space<vmem>>) attributes {dimension_semantics = [#tpu.dimension_semantics<parallel>], iteration_bounds = array<i64: 1>, scalar_prefetch = 0 : i64, scratch_operands = 0 : i64, tpu.core_type = #tpu.core_type<tc>, window_params = [{transform_indices = @transform_0, window_bounds = array<i64: 8, 128>}, {pipeline_mode = #tpu.pipeline_mode<synchronous>, transform_indices = @transform_1, window_bounds = array<i64: 128, 128>}, {pipeline_mode = #tpu.pipeline_mode<synchronous>, transform_indices = @transform_2, window_bounds = array<i64: 1, 128>}, {pipeline_mode = #tpu.pipeline_mode<synchronous>, transform_indices = @transform_3, window_bounds = array<i64: 3, 128, 384>}, {pipeline_mode = #tpu.pipeline_mode<synchronous>, transform_indices = @transform_4, window_bounds = array<i64: 3, 1, 384>}, {pipeline_mode = #tpu.pipeline_mode<synchronous>, transform_indices = @transform_5, window_bounds = array<i64: 128, 128>}, {pipeline_mode = #tpu.pipeline_mode<synchronous>, transform_indices = @transform_6, window_bounds = array<i64: 1, 128>}, {transform_indices = @transform_7, window_bounds = array<i64: 8, 128>}]} {
    %c0 = arith.constant 0 : index
    %c0_0 = arith.constant 0 : index
    %0 = vector.load %arg1[%c0, %c0_0] : memref<8x128xf32, #tpu.memory_space<vmem>>, vector<8x128xf32>
    %1 = arith.truncf %0 : vector<8x128xf32> to vector<8x128xbf16>
    %c0_1 = arith.constant 0 : index
    %c0_2 = arith.constant 0 : index
    %2 = vector.load %arg2[%c0_1, %c0_2] : memref<128x128xbf16, #tpu.memory_space<vmem>>, vector<128x128xbf16>
    %cst = arith.constant dense<0.000000e+00> : vector<8x128xf32>
    %3 = tpu.matmul %1, %2, %cst {dimension_numbers = #tpu.dot_dimension_numbers<[1], [0], [0], [1], [0, 0, 1, 1], [], []>} : vector<8x128xbf16>, vector<128x128xbf16>, vector<8x128xf32> -> vector<8x128xf32>
    %c0_3 = arith.constant 0 : index
    %c0_4 = arith.constant 0 : index
    %4 = vector.load %arg3[%c0_3, %c0_4] : memref<1x128xf32, #tpu.memory_space<vmem>>, vector<1x128xf32>
    %5 = vector.broadcast %4 : vector<1x128xf32> to vector<8x128xf32>
    %6 = arith.addf %3, %5 : vector<8x128xf32>
    %cst_5 = arith.constant 0.000000e+00 : f32
    %7 = vector.broadcast %cst_5 : f32 to vector<8x128xf32>
    %8 = arith.maximumf %6, %7 : vector<8x128xf32>
    %c0_i32 = arith.constant 0 : i32
    %9 = arith.truncf %8 : vector<8x128xf32> to vector<8x128xbf16>
    %10 = arith.index_cast %c0_i32 : i32 to index
    %c0_6 = arith.constant 0 : index
    %c0_7 = arith.constant 0 : index
    %11 = vector.load %arg4[%10, %c0_6, %c0_7] : memref<3x128x384xbf16, #tpu.memory_space<vmem>>, vector<1x128x384xbf16>
    %12 = vector.shape_cast %11 : vector<1x128x384xbf16> to vector<128x384xbf16>
    %cst_8 = arith.constant dense<0.000000e+00> : vector<8x384xf32>
    %13 = tpu.matmul %9, %12, %cst_8 {dimension_numbers = #tpu.dot_dimension_numbers<[1], [0], [0], [1], [0, 0, 1, 1], [], []>} : vector<8x128xbf16>, vector<128x384xbf16>, vector<8x384xf32> -> vector<8x384xf32>
    %14 = arith.index_cast %c0_i32 : i32 to index
    %c0_9 = arith.constant 0 : index
    %c0_10 = arith.constant 0 : index
    %15 = vector.load %arg5[%14, %c0_9, %c0_10] : memref<3x1x384xf32, #tpu.memory_space<vmem>>, vector<1x1x384xf32>
    %16 = vector.shape_cast %15 : vector<1x1x384xf32> to vector<1x384xf32>
    %17 = vector.broadcast %16 : vector<1x384xf32> to vector<8x384xf32>
    %18 = arith.addf %13, %17 : vector<8x384xf32>
    %19 = vector.extract_strided_slice %18 {offsets = [0, 0], sizes = [8, 128], strides = [1, 1]} : vector<8x384xf32> to vector<8x128xf32>
    %20 = arith.negf %19 : vector<8x128xf32>
    %21 = math.exp %20 : vector<8x128xf32>
    %cst_11 = arith.constant 1.000000e+00 : f32
    %22 = vector.broadcast %cst_11 : f32 to vector<8x128xf32>
    %23 = arith.addf %22, %21 : vector<8x128xf32>
    %24 = arith.divf %22, %23 : vector<8x128xf32>
    %25 = vector.extract_strided_slice %18 {offsets = [0, 128], sizes = [8, 128], strides = [1, 1]} : vector<8x384xf32> to vector<8x128xf32>
    %cst_12 = arith.constant 0.000000e+00 : f32
    %26 = vector.broadcast %cst_12 : f32 to vector<8x128xf32>
    %27 = arith.maximumf %25, %26 : vector<8x128xf32>
    %28 = vector.extract_strided_slice %18 {offsets = [0, 256], sizes = [8, 128], strides = [1, 1]} : vector<8x384xf32> to vector<8x128xf32>
    %29 = arith.subf %27, %28 : vector<8x128xf32>
    %30 = arith.mulf %24, %29 : vector<8x128xf32>
    %31 = arith.addf %28, %30 : vector<8x128xf32>
    %c1_i32 = arith.constant 1 : i32
    %32 = arith.truncf %31 : vector<8x128xf32> to vector<8x128xbf16>
    %33 = arith.index_cast %c1_i32 : i32 to index
    %c0_13 = arith.constant 0 : index
    %c0_14 = arith.constant 0 : index
    %34 = vector.load %arg4[%33, %c0_13, %c0_14] : memref<3x128x384xbf16, #tpu.memory_space<vmem>>, vector<1x128x384xbf16>
    %35 = vector.shape_cast %34 : vector<1x128x384xbf16> to vector<128x384xbf16>
    %cst_15 = arith.constant dense<0.000000e+00> : vector<8x384xf32>
    %36 = tpu.matmul %32, %35, %cst_15 {dimension_numbers = #tpu.dot_dimension_numbers<[1], [0], [0], [1], [0, 0, 1, 1], [], []>} : vector<8x128xbf16>, vector<128x384xbf16>, vector<8x384xf32> -> vector<8x384xf32>
    %37 = arith.index_cast %c1_i32 : i32 to index
    %c0_16 = arith.constant 0 : index
    %c0_17 = arith.constant 0 : index
    %38 = vector.load %arg5[%37, %c0_16, %c0_17] : memref<3x1x384xf32, #tpu.memory_space<vmem>>, vector<1x1x384xf32>
    %39 = vector.shape_cast %38 : vector<1x1x384xf32> to vector<1x384xf32>
    %40 = vector.broadcast %39 : vector<1x384xf32> to vector<8x384xf32>
    %41 = arith.addf %36, %40 : vector<8x384xf32>
    %42 = vector.extract_strided_slice %41 {offsets = [0, 0], sizes = [8, 128], strides = [1, 1]} : vector<8x384xf32> to vector<8x128xf32>
    %43 = arith.negf %42 : vector<8x128xf32>
    %44 = math.exp %43 : vector<8x128xf32>
    %cst_18 = arith.constant 1.000000e+00 : f32
    %45 = vector.broadcast %cst_18 : f32 to vector<8x128xf32>
    %46 = arith.addf %45, %44 : vector<8x128xf32>
    %47 = arith.divf %45, %46 : vector<8x128xf32>
    %48 = vector.extract_strided_slice %41 {offsets = [0, 128], sizes = [8, 128], strides = [1, 1]} : vector<8x384xf32> to vector<8x128xf32>
    %cst_19 = arith.constant 0.000000e+00 : f32
    %49 = vector.broadcast %cst_19 : f32 to vector<8x128xf32>
    %50 = arith.maximumf %48, %49 : vector<8x128xf32>
    %51 = vector.extract_strided_slice %41 {offsets = [0, 256], sizes = [8, 128], strides = [1, 1]} : vector<8x384xf32> to vector<8x128xf32>
    %52 = arith.subf %50, %51 : vector<8x128xf32>
    %53 = arith.mulf %47, %52 : vector<8x128xf32>
    %54 = arith.addf %51, %53 : vector<8x128xf32>
    %c2_i32 = arith.constant 2 : i32
    %55 = arith.truncf %54 : vector<8x128xf32> to vector<8x128xbf16>
    %56 = arith.index_cast %c2_i32 : i32 to index
    %c0_20 = arith.constant 0 : index
    %c0_21 = arith.constant 0 : index
    %57 = vector.load %arg4[%56, %c0_20, %c0_21] : memref<3x128x384xbf16, #tpu.memory_space<vmem>>, vector<1x128x384xbf16>
    %58 = vector.shape_cast %57 : vector<1x128x384xbf16> to vector<128x384xbf16>
    %cst_22 = arith.constant dense<0.000000e+00> : vector<8x384xf32>
    %59 = tpu.matmul %55, %58, %cst_22 {dimension_numbers = #tpu.dot_dimension_numbers<[1], [0], [0], [1], [0, 0, 1, 1], [], []>} : vector<8x128xbf16>, vector<128x384xbf16>, vector<8x384xf32> -> vector<8x384xf32>
    %60 = arith.index_cast %c2_i32 : i32 to index
    %c0_23 = arith.constant 0 : index
    %c0_24 = arith.constant 0 : index
    %61 = vector.load %arg5[%60, %c0_23, %c0_24] : memref<3x1x384xf32, #tpu.memory_space<vmem>>, vector<1x1x384xf32>
    %62 = vector.shape_cast %61 : vector<1x1x384xf32> to vector<1x384xf32>
    %63 = vector.broadcast %62 : vector<1x384xf32> to vector<8x384xf32>
    %64 = arith.addf %59, %63 : vector<8x384xf32>
    %65 = vector.extract_strided_slice %64 {offsets = [0, 0], sizes = [8, 128], strides = [1, 1]} : vector<8x384xf32> to vector<8x128xf32>
    %66 = arith.negf %65 : vector<8x128xf32>
    %67 = math.exp %66 : vector<8x128xf32>
    %cst_25 = arith.constant 1.000000e+00 : f32
    %68 = vector.broadcast %cst_25 : f32 to vector<8x128xf32>
    %69 = arith.addf %68, %67 : vector<8x128xf32>
    %70 = arith.divf %68, %69 : vector<8x128xf32>
    %71 = vector.extract_strided_slice %64 {offsets = [0, 128], sizes = [8, 128], strides = [1, 1]} : vector<8x384xf32> to vector<8x128xf32>
    %cst_26 = arith.constant 0.000000e+00 : f32
    %72 = vector.broadcast %cst_26 : f32 to vector<8x128xf32>
    %73 = arith.maximumf %71, %72 : vector<8x128xf32>
    %74 = vector.extract_strided_slice %64 {offsets = [0, 256], sizes = [8, 128], strides = [1, 1]} : vector<8x384xf32> to vector<8x128xf32>
    %75 = arith.subf %73, %74 : vector<8x128xf32>
    %76 = arith.mulf %70, %75 : vector<8x128xf32>
    %77 = arith.addf %74, %76 : vector<8x128xf32>
    %c3_i32 = arith.constant 3 : i32
    %78 = arith.truncf %77 : vector<8x128xf32> to vector<8x128xbf16>
    %c0_27 = arith.constant 0 : index
    %c0_28 = arith.constant 0 : index
    %79 = vector.load %arg6[%c0_27, %c0_28] : memref<128x128xbf16, #tpu.memory_space<vmem>>, vector<128x128xbf16>
    %cst_29 = arith.constant dense<0.000000e+00> : vector<8x128xf32>
    %80 = tpu.matmul %78, %79, %cst_29 {dimension_numbers = #tpu.dot_dimension_numbers<[1], [0], [0], [1], [0, 0, 1, 1], [], []>} : vector<8x128xbf16>, vector<128x128xbf16>, vector<8x128xf32> -> vector<8x128xf32>
    %c0_30 = arith.constant 0 : index
    %c0_31 = arith.constant 0 : index
    %81 = vector.load %arg7[%c0_30, %c0_31] : memref<1x128xf32, #tpu.memory_space<vmem>>, vector<1x128xf32>
    %82 = vector.broadcast %81 : vector<1x128xf32> to vector<8x128xf32>
    %83 = arith.addf %80, %82 : vector<8x128xf32>
    %84 = tpu.iota {dimensions = array<i32: 1>} : vector<8x128xi32>
    %c10_i32 = arith.constant 10 : i32
    %85 = vector.broadcast %c10_i32 : i32 to vector<8x128xi32>
    %86 = arith.cmpi slt, %84, %85 : vector<8x128xi32>
    %cst_32 = arith.constant -1.000000e+30 : f32
    %87 = vector.broadcast %cst_32 : f32 to vector<8x128xf32>
    %88 = arith.select %86, %83, %87 : vector<8x128xi1>, vector<8x128xf32>
    %cst_33 = arith.constant dense<0xFF800000> : vector<8xf32>
    %89 = vector.multi_reduction <maximumf>, %88, %cst_33 [1] : vector<8x128xf32> to vector<8xf32>
    %90 = vector.shape_cast %89 : vector<8xf32> to vector<8x1xf32>
    %91 = vector.broadcast %90 : vector<8x1xf32> to vector<8x128xf32>
    %92 = arith.subf %88, %91 : vector<8x128xf32>
    %93 = math.exp %92 : vector<8x128xf32>
    %cst_34 = arith.constant dense<0.000000e+00> : vector<8xf32>
    %94 = vector.multi_reduction <add>, %93, %cst_34 [1] : vector<8x128xf32> to vector<8xf32>
    %95 = vector.shape_cast %94 : vector<8xf32> to vector<8x1xf32>
    %96 = tpu.reciprocal %95 {approx = true} : vector<8x1xf32> -> vector<8x1xf32>
    %97 = vector.broadcast %96 : vector<8x1xf32> to vector<8x128xf32>
    %98 = arith.mulf %93, %97 : vector<8x128xf32>
    %c0_35 = arith.constant 0 : index
    %c0_36 = arith.constant 0 : index
    %99 = vector.load %arg8[%c0_35, %c0_36] : memref<8x128xf32, #tpu.memory_space<vmem>>, vector<8x128xf32>
    tpu.vector_store %arg8[%c0_35, %c0_36], %98 {strides = array<i32>} : memref<8x128xf32, #tpu.memory_space<vmem>>, vector<8x128xf32>,
    return
  }
  func.func @transform_0(%arg0: i32) -> (i32, i32) {
    %c0_i32 = arith.constant 0 : i32
    %c0_i32_0 = arith.constant 0 : i32
    return %arg0, %c0_i32 : i32, i32
  }
  func.func @transform_1(%arg0: i32) -> (i32, i32) {
    %c0_i32 = arith.constant 0 : i32
    %c0_i32_0 = arith.constant 0 : i32
    %c0_i32_1 = arith.constant 0 : i32
    return %c0_i32, %c0_i32_0 : i32, i32
  }
  func.func @transform_2(%arg0: i32) -> (i32, i32) {
    %c0_i32 = arith.constant 0 : i32
    %c0_i32_0 = arith.constant 0 : i32
    %c0_i32_1 = arith.constant 0 : i32
    return %c0_i32, %c0_i32_0 : i32, i32
  }
  func.func @transform_3(%arg0: i32) -> (i32, i32, i32) {
    %c0_i32 = arith.constant 0 : i32
    %c0_i32_0 = arith.constant 0 : i32
    %c0_i32_1 = arith.constant 0 : i32
    %c0_i32_2 = arith.constant 0 : i32
    return %c0_i32, %c0_i32_0, %c0_i32_1 : i32, i32, i32
  }
  func.func @transform_4(%arg0: i32) -> (i32, i32, i32) {
    %c0_i32 = arith.constant 0 : i32
    %c0_i32_0 = arith.constant 0 : i32
    %c0_i32_1 = arith.constant 0 : i32
    %c0_i32_2 = arith.constant 0 : i32
    return %c0_i32, %c0_i32_0, %c0_i32_1 : i32, i32, i32
  }
  func.func @transform_5(%arg0: i32) -> (i32, i32) {
    %c0_i32 = arith.constant 0 : i32
    %c0_i32_0 = arith.constant 0 : i32
    %c0_i32_1 = arith.constant 0 : i32
    return %c0_i32, %c0_i32_0 : i32, i32
  }
  func.func @transform_6(%arg0: i32) -> (i32, i32) {
    %c0_i32 = arith.constant 0 : i32
    %c0_i32_0 = arith.constant 0 : i32
    %c0_i32_1 = arith.constant 0 : i32
    return %c0_i32, %c0_i32_0 : i32, i32
  }
  func.func @transform_7(%arg0: i32) -> (i32, i32) {
    %c0_i32 = arith.constant 0 : i32
    %c0_i32_0 = arith.constant 0 : i32
    return %arg0, %c0_i32 : i32, i32
  }
}

module attributes {stable_mosaic.version = 11 : i64} {
  func.func @_highway_kernel(%arg0: i32, %arg1: memref<8x128xf32, #tpu.memory_space<vmem>>, %arg2: memref<128x128xbf16, #tpu.memory_space<vmem>>, %arg3: memref<1x128xf32, #tpu.memory_space<vmem>>, %arg4: memref<3x128x384xbf16, #tpu.memory_space<vmem>>, %arg5: memref<3x1x384xf32, #tpu.memory_space<vmem>>, %arg6: memref<128x128xbf16, #tpu.memory_space<vmem>>, %arg7: memref<1x128xf32, #tpu.memory_space<vmem>>, %arg8: memref<8x128xf32, #tpu.memory_space<vmem>>) attributes {dimension_semantics = [#tpu.dimension_semantics<parallel>], iteration_bounds = array<i64: 1>, scalar_prefetch = 0 : i64, scratch_operands = 0 : i64, tpu.core_type = #tpu.core_type<tc>, window_params = [{transform_indices = @transform_0, window_bounds = array<i64: 8, 128>}, {pipeline_mode = #tpu.pipeline_mode<synchronous>, transform_indices = @transform_1, window_bounds = array<i64: 128, 128>}, {pipeline_mode = #tpu.pipeline_mode<synchronous>, transform_indices = @transform_2, window_bounds = array<i64: 1, 128>}, {pipeline_mode = #tpu.pipeline_mode<synchronous>, transform_indices = @transform_3, window_bounds = array<i64: 3, 128, 384>}, {pipeline_mode = #tpu.pipeline_mode<synchronous>, transform_indices = @transform_4, window_bounds = array<i64: 3, 1, 384>}, {pipeline_mode = #tpu.pipeline_mode<synchronous>, transform_indices = @transform_5, window_bounds = array<i64: 128, 128>}, {pipeline_mode = #tpu.pipeline_mode<synchronous>, transform_indices = @transform_6, window_bounds = array<i64: 1, 128>}, {transform_indices = @transform_7, window_bounds = array<i64: 8, 128>}]} {
    %c0 = arith.constant 0 : index
    %c0_0 = arith.constant 0 : index
    %0 = vector.load %arg1[%c0, %c0_0] : memref<8x128xf32, #tpu.memory_space<vmem>>, vector<8x128xf32>
    %1 = arith.truncf %0 : vector<8x128xf32> to vector<8x128xbf16>
    %c0_1 = arith.constant 0 : index
    %c0_2 = arith.constant 0 : index
    %2 = vector.load %arg2[%c0_1, %c0_2] : memref<128x128xbf16, #tpu.memory_space<vmem>>, vector<128x128xbf16>
    %cst = arith.constant dense<0.000000e+00> : vector<8x128xf32>
    %3 = tpu.matmul %1, %2, %cst {dimension_numbers = #tpu.dot_dimension_numbers<[1], [0], [0], [1], [0, 0, 1, 1], [], []>} : vector<8x128xbf16>, vector<128x128xbf16>, vector<8x128xf32> -> vector<8x128xf32>
    %c0_3 = arith.constant 0 : index
    %c0_4 = arith.constant 0 : index
    %4 = vector.load %arg3[%c0_3, %c0_4] : memref<1x128xf32, #tpu.memory_space<vmem>>, vector<1x128xf32>
    %5 = vector.broadcast %4 : vector<1x128xf32> to vector<8x128xf32>
    %6 = arith.addf %3, %5 : vector<8x128xf32>
    %cst_5 = arith.constant 0.000000e+00 : f32
    %7 = vector.broadcast %cst_5 : f32 to vector<8x128xf32>
    %8 = arith.maximumf %6, %7 : vector<8x128xf32>
    %c0_i32 = arith.constant 0 : i32
    %9 = arith.truncf %8 : vector<8x128xf32> to vector<8x128xbf16>
    %10 = arith.index_cast %c0_i32 : i32 to index
    %c0_6 = arith.constant 0 : index
    %c0_7 = arith.constant 0 : index
    %11 = vector.load %arg4[%10, %c0_6, %c0_7] : memref<3x128x384xbf16, #tpu.memory_space<vmem>>, vector<1x128x384xbf16>
    %12 = vector.shape_cast %11 : vector<1x128x384xbf16> to vector<128x384xbf16>
    %cst_8 = arith.constant dense<0.000000e+00> : vector<8x384xf32>
    %13 = tpu.matmul %9, %12, %cst_8 {dimension_numbers = #tpu.dot_dimension_numbers<[1], [0], [0], [1], [0, 0, 1, 1], [], []>} : vector<8x128xbf16>, vector<128x384xbf16>, vector<8x384xf32> -> vector<8x384xf32>
    %14 = arith.index_cast %c0_i32 : i32 to index
    %c0_9 = arith.constant 0 : index
    %c0_10 = arith.constant 0 : index
    %15 = vector.load %arg5[%14, %c0_9, %c0_10] : memref<3x1x384xf32, #tpu.memory_space<vmem>>, vector<1x1x384xf32>
    %16 = vector.shape_cast %15 : vector<1x1x384xf32> to vector<1x384xf32>
    %17 = vector.broadcast %16 : vector<1x384xf32> to vector<8x384xf32>
    %18 = arith.addf %13, %17 : vector<8x384xf32>
    %19 = vector.extract_strided_slice %18 {offsets = [0, 0], sizes = [8, 128], strides = [1, 1]} : vector<8x384xf32> to vector<8x128xf32>
    %20 = arith.negf %19 : vector<8x128xf32>
    %21 = math.exp %20 : vector<8x128xf32>
    %cst_11 = arith.constant 1.000000e+00 : f32
    %22 = vector.broadcast %cst_11 : f32 to vector<8x128xf32>
    %23 = arith.addf %22, %21 : vector<8x128xf32>
    %24 = arith.divf %22, %23 : vector<8x128xf32>
    %25 = vector.extract_strided_slice %18 {offsets = [0, 128], sizes = [8, 128], strides = [1, 1]} : vector<8x384xf32> to vector<8x128xf32>
    %cst_12 = arith.constant 0.000000e+00 : f32
    %26 = vector.broadcast %cst_12 : f32 to vector<8x128xf32>
    %27 = arith.maximumf %25, %26 : vector<8x128xf32>
    %28 = vector.extract_strided_slice %18 {offsets = [0, 256], sizes = [8, 128], strides = [1, 1]} : vector<8x384xf32> to vector<8x128xf32>
    %29 = arith.subf %27, %28 : vector<8x128xf32>
    %30 = arith.mulf %24, %29 : vector<8x128xf32>
    %31 = arith.addf %28, %30 : vector<8x128xf32>
    %c1_i32 = arith.constant 1 : i32
    %32 = arith.truncf %31 : vector<8x128xf32> to vector<8x128xbf16>
    %33 = arith.index_cast %c1_i32 : i32 to index
    %c0_13 = arith.constant 0 : index
    %c0_14 = arith.constant 0 : index
    %34 = vector.load %arg4[%33, %c0_13, %c0_14] : memref<3x128x384xbf16, #tpu.memory_space<vmem>>, vector<1x128x384xbf16>
    %35 = vector.shape_cast %34 : vector<1x128x384xbf16> to vector<128x384xbf16>
    %cst_15 = arith.constant dense<0.000000e+00> : vector<8x384xf32>
    %36 = tpu.matmul %32, %35, %cst_15 {dimension_numbers = #tpu.dot_dimension_numbers<[1], [0], [0], [1], [0, 0, 1, 1], [], []>} : vector<8x128xbf16>, vector<128x384xbf16>, vector<8x384xf32> -> vector<8x384xf32>
    %37 = arith.index_cast %c1_i32 : i32 to index
    %c0_16 = arith.constant 0 : index
    %c0_17 = arith.constant 0 : index
    %38 = vector.load %arg5[%37, %c0_16, %c0_17] : memref<3x1x384xf32, #tpu.memory_space<vmem>>, vector<1x1x384xf32>
    %39 = vector.shape_cast %38 : vector<1x1x384xf32> to vector<1x384xf32>
    %40 = vector.broadcast %39 : vector<1x384xf32> to vector<8x384xf32>
    %41 = arith.addf %36, %40 : vector<8x384xf32>
    %42 = vector.extract_strided_slice %41 {offsets = [0, 0], sizes = [8, 128], strides = [1, 1]} : vector<8x384xf32> to vector<8x128xf32>
    %43 = arith.negf %42 : vector<8x128xf32>
    %44 = math.exp %43 : vector<8x128xf32>
    %cst_18 = arith.constant 1.000000e+00 : f32
    %45 = vector.broadcast %cst_18 : f32 to vector<8x128xf32>
    %46 = arith.addf %45, %44 : vector<8x128xf32>
    %47 = arith.divf %45, %46 : vector<8x128xf32>
    %48 = vector.extract_strided_slice %41 {offsets = [0, 128], sizes = [8, 128], strides = [1, 1]} : vector<8x384xf32> to vector<8x128xf32>
    %cst_19 = arith.constant 0.000000e+00 : f32
    %49 = vector.broadcast %cst_19 : f32 to vector<8x128xf32>
    %50 = arith.maximumf %48, %49 : vector<8x128xf32>
    %51 = vector.extract_strided_slice %41 {offsets = [0, 256], sizes = [8, 128], strides = [1, 1]} : vector<8x384xf32> to vector<8x128xf32>
    %52 = arith.subf %50, %51 : vector<8x128xf32>
    %53 = arith.mulf %47, %52 : vector<8x128xf32>
    %54 = arith.addf %51, %53 : vector<8x128xf32>
    %c2_i32 = arith.constant 2 : i32
    %55 = arith.truncf %54 : vector<8x128xf32> to vector<8x128xbf16>
    %56 = arith.index_cast %c2_i32 : i32 to index
    %c0_20 = arith.constant 0 : index
    %c0_21 = arith.constant 0 : index
    %57 = vector.load %arg4[%56, %c0_20, %c0_21] : memref<3x128x384xbf16, #tpu.memory_space<vmem>>, vector<1x128x384xbf16>
    %58 = vector.shape_cast %57 : vector<1x128x384xbf16> to vector<128x384xbf16>
    %cst_22 = arith.constant dense<0.000000e+00> : vector<8x384xf32>
    %59 = tpu.matmul %55, %58, %cst_22 {dimension_numbers = #tpu.dot_dimension_numbers<[1], [0], [0], [1], [0, 0, 1, 1], [], []>} : vector<8x128xbf16>, vector<128x384xbf16>, vector<8x384xf32> -> vector<8x384xf32>
    %60 = arith.index_cast %c2_i32 : i32 to index
    %c0_23 = arith.constant 0 : index
    %c0_24 = arith.constant 0 : index
    %61 = vector.load %arg5[%60, %c0_23, %c0_24] : memref<3x1x384xf32, #tpu.memory_space<vmem>>, vector<1x1x384xf32>
    %62 = vector.shape_cast %61 : vector<1x1x384xf32> to vector<1x384xf32>
    %63 = vector.broadcast %62 : vector<1x384xf32> to vector<8x384xf32>
    %64 = arith.addf %59, %63 : vector<8x384xf32>
    %65 = vector.extract_strided_slice %64 {offsets = [0, 0], sizes = [8, 128], strides = [1, 1]} : vector<8x384xf32> to vector<8x128xf32>
    %66 = arith.negf %65 : vector<8x128xf32>
    %67 = math.exp %66 : vector<8x128xf32>
    %cst_25 = arith.constant 1.000000e+00 : f32
    %68 = vector.broadcast %cst_25 : f32 to vector<8x128xf32>
    %69 = arith.addf %68, %67 : vector<8x128xf32>
    %70 = arith.divf %68, %69 : vector<8x128xf32>
    %71 = vector.extract_strided_slice %64 {offsets = [0, 128], sizes = [8, 128], strides = [1, 1]} : vector<8x384xf32> to vector<8x128xf32>
    %cst_26 = arith.constant 0.000000e+00 : f32
    %72 = vector.broadcast %cst_26 : f32 to vector<8x128xf32>
    %73 = arith.maximumf %71, %72 : vector<8x128xf32>
    %74 = vector.extract_strided_slice %64 {offsets = [0, 256], sizes = [8, 128], strides = [1, 1]} : vector<8x384xf32> to vector<8x128xf32>
    %75 = arith.subf %73, %74 : vector<8x128xf32>
    %76 = arith.mulf %70, %75 : vector<8x128xf32>
    %77 = arith.addf %74, %76 : vector<8x128xf32>
    %c3_i32 = arith.constant 3 : i32
    %78 = arith.truncf %77 : vector<8x128xf32> to vector<8x128xbf16>
    %c0_27 = arith.constant 0 : index
    %c0_28 = arith.constant 0 : index
    %79 = vector.load %arg6[%c0_27, %c0_28] : memref<128x128xbf16, #tpu.memory_space<vmem>>, vector<128x128xbf16>
    %cst_29 = arith.constant dense<0.000000e+00> : vector<8x128xf32>
    %80 = tpu.matmul %78, %79, %cst_29 {dimension_numbers = #tpu.dot_dimension_numbers<[1], [0], [0], [1], [0, 0, 1, 1], [], []>} : vector<8x128xbf16>, vector<128x128xbf16>, vector<8x128xf32> -> vector<8x128xf32>
    %c0_30 = arith.constant 0 : index
    %c0_31 = arith.constant 0 : index
    %81 = vector.load %arg7[%c0_30, %c0_31] : memref<1x128xf32, #tpu.memory_space<vmem>>, vector<1x128xf32>
    %82 = vector.broadcast %81 : vector<1x128xf32> to vector<8x128xf32>
    %83 = arith.addf %80, %82 : vector<8x128xf32>
    %84 = tpu.iota {dimensions = array<i32: 1>} : vector<8x128xi32>
    %c10_i32 = arith.constant 10 : i32
    %85 = vector.broadcast %c10_i32 : i32 to vector<8x128xi32>
    %86 = arith.cmpi slt, %84, %85 : vector<8x128xi32>
    %cst_32 = arith.constant -1.000000e+30 : f32
    %87 = vector.broadcast %cst_32 : f32 to vector<8x128xf32>
    %88 = arith.select %86, %83, %87 : vector<8x128xi1>, vector<8x128xf32>
    %cst_33 = arith.constant dense<0xFF800000> : vector<8xf32>
    %89 = vector.multi_reduction <maximumf>, %88, %cst_33 [1] : vector<8x128xf32> to vector<8xf32>
    %90 = vector.shape_cast %89 : vector<8xf32> to vector<8x1xf32>
    %91 = vector.broadcast %90 : vector<8x1xf32> to vector<8x128xf32>
    %92 = arith.subf %88, %91 : vector<8x128xf32>
    %93 = math.exp %92 : vector<8x128xf32>
    %cst_34 = arith.constant dense<0.000000e+00> : vector<8xf32>
    %94 = vector.multi_reduction <add>, %93, %cst_34 [1] : vector<8x128xf32> to vector<8xf32>
    %95 = vector.shape_cast %94 : vector<8xf32> to vector<8x1xf32>
    %96 = tpu.reciprocal %95 {approx = true} : vector<8x1xf32> -> vector<8x1xf32>
    %97 = vector.broadcast %96 : vector<8x1xf32> to vector<8x128xf32>
    %98 = arith.mulf %93, %97 : vector<8x128xf32>
    %c0_35 = arith.constant 0 : index
    %c0_36 = arith.constant 0 : index
    %99 = vector.load %arg8[%c0_35, %c0_36] : memref<8x128xf32, #tpu.memory_space<vmem>>, vector<8x128xf32>
    tpu.vector_store %arg8[%c0_35, %c0_36], %98 {strides = array<i32>} : memref<8x128xf32, #tpu.memory_space<vmem>>, vector<8x128xf32>,
    return
  }
  func.func @transform_0(%arg0: i32) -> (i32, i32) {
    %c0_i32 = arith.constant 0 : i32
    %c0_i32_0 = arith.constant 0 : i32
    return %arg0, %c0_i32 : i32, i32
  }
  func.func @transform_1(%arg0: i32) -> (i32, i32) {
    %c0_i32 = arith.constant 0 : i32
    %c0_i32_0 = arith.constant 0 : i32
    %c0_i32_1 = arith.constant 0 : i32
    return %c0_i32, %c0_i32_0 : i32, i32
  }
  func.func @transform_2(%arg0: i32) -> (i32, i32) {
    %c0_i32 = arith.constant 0 : i32
    %c0_i32_0 = arith.constant 0 : i32
    %c0_i32_1 = arith.constant 0 : i32
    return %c0_i32, %c0_i32_0 : i32, i32
  }
  func.func @transform_3(%arg0: i32) -> (i32, i32, i32) {
    %c0_i32 = arith.constant 0 : i32
    %c0_i32_0 = arith.constant 0 : i32
    %c0_i32_1 = arith.constant 0 : i32
    %c0_i32_2 = arith.constant 0 : i32
    return %c0_i32, %c0_i32_0, %c0_i32_1 : i32, i32, i32
  }
  func.func @transform_4(%arg0: i32) -> (i32, i32, i32) {
    %c0_i32 = arith.constant 0 : i32
    %c0_i32_0 = arith.constant 0 : i32
    %c0_i32_1 = arith.constant 0 : i32
    %c0_i32_2 = arith.constant 0 : i32
    return %c0_i32, %c0_i32_0, %c0_i32_1 : i32, i32, i32
  }
  func.func @transform_5(%arg0: i32) -> (i32, i32) {
    %c0_i32 = arith.constant 0 : i32
    %c0_i32_0 = arith.constant 0 : i32
    %c0_i32_1 = arith.constant 0 : i32
    return %c0_i32, %c0_i32_0 : i32, i32
  }
  func.func @transform_6(%arg0: i32) -> (i32, i32) {
    %c0_i32 = arith.constant 0 : i32
    %c0_i32_0 = arith.constant 0 : i32
    %c0_i32_1 = arith.constant 0 : i32
    return %c0_i32, %c0_i32_0 : i32, i32
  }
  func.func @transform_7(%arg0: i32) -> (i32, i32) {
    %c0_i32 = arith.constant 0 : i32
    %c0_i32_0 = arith.constant 0 : i32
    return %arg0, %c0_i32 : i32, i32
  }
}

</mosaic_0001>

<llo_original>
// kernel: tpu_custom_call.1
$region0: #{tpu_custom_call.1}
  #allocation0 [shape = 'u32[]', space=smem, size = 0x4, offset = 0x4, fixed_abs, tag = 'smem constant byte address 0x4 - core index']
  #allocation1 [shape = 'u32[144,128]{1,0:T(1,128)}', space=vmem, size = 0x12000, scoped, tag = 'internal scratch']
  %s0 = inlined_call_operand.hbm [shape: f32[8,128], index: 0, kind: input, shape index: {}]
  %s1 = inlined_call_operand.hbm [shape: bf16[128,128], index: 1, kind: input, shape index: {}]
  %s2 = inlined_call_operand.vmem [shape: f32[1,128], index: 2, kind: input, shape index: {}]
  %s3 = inlined_call_operand.hbm [shape: bf16[3,128,384], index: 3, kind: input, shape index: {}]
  %s4 = inlined_call_operand.vmem [shape: f32[3,1,384], index: 4, kind: input, shape index: {}]
  %s5 = inlined_call_operand.hbm [shape: bf16[128,128], index: 5, kind: input, shape index: {}]
  %s6 = inlined_call_operand.vmem [shape: f32[1,128], index: 6, kind: input, shape index: {}]
  %s7 = inlined_call_operand.hbm [shape: f32[8,128], index: 7, kind: output, shape index: {}]
  %s8 = sld [smem:[#allocation0]]
  $region54: #{tpu_custom_call.1} parent=0
    _
  %s10 = ssub.s32 1, %s8
  %s11 = scalar_select 0, %s10, %s8
  $region1: #{tpu_custom_call.1} parent=0
    #allocation2 [shape = 'u8[4096]{0}', space=vmem, size = 0x1000, scoped, tag = 'input window, operand 0, single buffered']
    #allocation3 [shape = 's32[1]{0}', space=sflag, size = 0x4, scoped, tag = 'scoped memory for tpu_custom_call.1']
    #allocation4 [shape = 's32[1]{0}', space=sflag, size = 0x4, scoped, tag = 'scoped memory for tpu_custom_call.1']
    #allocation5 [shape = 'u8[32768]{0}', space=vmem, size = 0x8000, scoped, tag = 'input window, operand 1, single buffered']
    #allocation6 [shape = 's32[1]{0}', space=sflag, size = 0x4, scoped, tag = 'scoped memory for tpu_custom_call.1']
    #allocation7 [shape = 'u8[294912]{0}', space=vmem, size = 0x48000, scoped, tag = 'input window, operand 3, single buffered']
    #allocation8 [shape = 'u8[32768]{0}', space=vmem, size = 0x8000, scoped, tag = 'input window, operand 5, single buffered']
    #allocation9 [shape = 's32[1]{0}', space=sflag, size = 0x4, scoped, tag = 'scoped memory for tpu_custom_call.1']
    #allocation10 [shape = 'u8[4096]{0}', space=vmem, size = 0x1000, scoped, tag = 'output window, operand 0, single buffered']
    %12 = vsyncpa [#allocation3], 0
    %13 = vsyncpa [#allocation6], 0
    %14 = vsyncpa [#allocation9], 0
    %15 = vsyncpa [#allocation4], 0
    // Predicated region
    $region2: #{tpu_custom_call.1} parent=1 // pred_check
      _
    $region3: #{tpu_custom_call.1} parent=1 // pred_check_branch
      %17 = sbr.rel (0) target = $region5
    $region4: #{tpu_custom_call.1} parent=1 // pred_region
      %s19 = ssub.s32 128, 128
      %20 = vsyncadd [#allocation3], %s19
      %s22 = sshll.u32 [#allocation2], 4
      %s23 = int_to_ptr.vmem [resolvable:$true] %s22
      %25 = dma.hbm_to_vmem [thread:$0]  %s0, 128, %s23, [#allocation3]
    $region5: #{tpu_custom_call.1} parent=1 // pred_fallthru
      _
    // Predicated region
    $region6: #{tpu_custom_call.1} parent=1 // pred_check
      _
    $region7: #{tpu_custom_call.1} parent=1 // pred_check_branch
      %27 = sbr.rel (0) target = $region9
    $region8: #{tpu_custom_call.1} parent=1 // pred_region
      %s29 = ssub.s32 1024, 1024
      %30 = vsyncadd [#allocation6], %s29
      %s31 = sshll.u32 [#allocation5], 4
      %s32 = int_to_ptr.vmem [resolvable:$true] %s31
      %37 = dma.hbm_to_vmem [thread:$0]  %s1, 1024, %s32, [#allocation6], 64, 64, 4
    $region9: #{tpu_custom_call.1} parent=1 // pred_fallthru
      _
    // Predicated region
    $region10: #{tpu_custom_call.1} parent=1 // pred_check
      _
    $region11: #{tpu_custom_call.1} parent=1 // pred_check_branch
      %39 = sbr.rel (0) target = $region13
    $region12: #{tpu_custom_call.1} parent=1 // pred_region
      _
    $region13: #{tpu_custom_call.1} parent=1 // pred_fallthru
      _
    // Predicated region
    $region14: #{tpu_custom_call.1} parent=1 // pred_check
      _
    $region15: #{tpu_custom_call.1} parent=1 // pred_check_branch
      %41 = sbr.rel (0) target = $region17
    $region16: #{tpu_custom_call.1} parent=1 // pred_region
      %s43 = ssub.s32 9216, 9216
      %44 = vsyncadd [#allocation6], %s43
      %s45 = sshll.u32 [#allocation7], 4
      %s46 = int_to_ptr.vmem [resolvable:$true] %s45
      %51 = dma.hbm_to_vmem [thread:$0]  %s3, 9216, %s46, [#allocation6], 192, 192, 12
    $region17: #{tpu_custom_call.1} parent=1 // pred_fallthru
      _
    // Predicated region
    $region18: #{tpu_custom_call.1} parent=1 // pred_check
      _
    $region19: #{tpu_custom_call.1} parent=1 // pred_check_branch
      %53 = sbr.rel (0) target = $region21
    $region20: #{tpu_custom_call.1} parent=1 // pred_region
      _
    $region21: #{tpu_custom_call.1} parent=1 // pred_fallthru
      _
    // Predicated region
    $region22: #{tpu_custom_call.1} parent=1 // pred_check
      _
    $region23: #{tpu_custom_call.1} parent=1 // pred_check_branch
      %55 = sbr.rel (0) target = $region25
    $region24: #{tpu_custom_call.1} parent=1 // pred_region
      %s57 = ssub.s32 1024, 1024
      %58 = vsyncadd [#allocation9], %s57
      %s59 = sshll.u32 [#allocation8], 4
      %s60 = int_to_ptr.vmem [resolvable:$true] %s59
      %65 = dma.hbm_to_vmem [thread:$0]  %s5, 1024, %s60, [#allocation9], 64, 64, 4
    $region25: #{tpu_custom_call.1} parent=1 // pred_fallthru
      _
    // Predicated region
    $region26: #{tpu_custom_call.1} parent=1 // pred_check
      _
    $region27: #{tpu_custom_call.1} parent=1 // pred_check_branch
      %67 = sbr.rel (0) target = $region29
    $region28: #{tpu_custom_call.1} parent=1 // pred_region
      _
    $region29: #{tpu_custom_call.1} parent=1 // pred_fallthru
      _
    // Predicated region
    $region30: #{tpu_custom_call.1} parent=1 // pred_check
      _
    $region31: #{tpu_custom_call.1} parent=1 // pred_check_branch
      %69 = sbr.rel (0) target = $region33
    $region32: #{tpu_custom_call.1} parent=1 // pred_region
      %70 = dma.done [#allocation3], 128
    $region33: #{tpu_custom_call.1} parent=1 // pred_fallthru
      _
    // Predicated region
    $region34: #{tpu_custom_call.1} parent=1 // pred_check
      _
    $region35: #{tpu_custom_call.1} parent=1 // pred_check_branch
      %72 = sbr.rel (0) target = $region37
    $region36: #{tpu_custom_call.1} parent=1 // pred_region
      %73 = dma.done [#allocation6], 1024
    $region37: #{tpu_custom_call.1} parent=1 // pred_fallthru
      _
    // Predicated region
    $region38: #{tpu_custom_call.1} parent=1 // pred_check
      _
    $region39: #{tpu_custom_call.1} parent=1 // pred_check_branch
      %75 = sbr.rel (0) target = $region41
    $region40: #{tpu_custom_call.1} parent=1 // pred_region
      %76 = dma.done [#allocation6], 9216
    $region41: #{tpu_custom_call.1} parent=1 // pred_fallthru
      _
    // Predicated region
    $region42: #{tpu_custom_call.1} parent=1 // pred_check
      _
    $region43: #{tpu_custom_call.1} parent=1 // pred_check_branch
      %78 = sbr.rel (0) target = $region45
    $region44: #{tpu_custom_call.1} parent=1 // pred_region
      %79 = dma.done [#allocation9], 1024
    $region45: #{tpu_custom_call.1} parent=1 // pred_fallthru
      _
    %v81 = vld [vmem:[#allocation2] sm:$0xff]
    %v82 = vpack.c.bf16 %v81, %v81
    %v83 = vld [vmem:[#allocation5] sm:$0xf]
    %v84 = vld [vmem:[#allocation5 + $0x4] sm:$0xf]
    %v85 = vld [vmem:[#allocation5 + $0x8] sm:$0xf]
    %v86 = vld [vmem:[#allocation5 + $0xc] sm:$0xf]
    %v87 = vld [vmem:[#allocation5 + $0x10] sm:$0xf]
    %v88 = vld [vmem:[#allocation5 + $0x14] sm:$0xf]
    %v89 = vld [vmem:[#allocation5 + $0x18] sm:$0xf]
    %v90 = vld [vmem:[#allocation5 + $0x1c] sm:$0xf]
    %v91 = vld [vmem:[#allocation5 + $0x20] sm:$0xf]
    %v92 = vld [vmem:[#allocation5 + $0x24] sm:$0xf]
    %v93 = vld [vmem:[#allocation5 + $0x28] sm:$0xf]
    %v94 = vld [vmem:[#allocation5 + $0x2c] sm:$0xf]
    %v95 = vld [vmem:[#allocation5 + $0x30] sm:$0xf]
    %v96 = vld [vmem:[#allocation5 + $0x34] sm:$0xf]
    %v97 = vld [vmem:[#allocation5 + $0x38] sm:$0xf]
    %v98 = vld [vmem:[#allocation5 + $0x3c] sm:$0xf]
    %v99 = vld [vmem:[%s2] sm:$0x1]
    %v101 = vlaneseq
    %v102 = vshrl.u32 %v101, 7
    %v103 = vsub.s32 0, %v102
    %v104 = vrot.slane %v99, %v103
    %v122 = vunpack.c.l.b16 %v83
    %v123 = vunpack.c.l.b16 %v84
    %v124 = vunpack.c.l.b16 %v85
    %v125 = vunpack.c.l.b16 %v86
    %v126 = vunpack.c.l.b16 %v87
    %v127 = vunpack.c.l.b16 %v88
    %v128 = vunpack.c.l.b16 %v89
    %v129 = vunpack.c.l.b16 %v90
    %v130 = vunpack.c.l.b16 %v91
    %v131 = vunpack.c.l.b16 %v92
    %v132 = vunpack.c.l.b16 %v93
    %v133 = vunpack.c.l.b16 %v94
    %v134 = vunpack.c.l.b16 %v95
    %v135 = vunpack.c.l.b16 %v96
    %v136 = vunpack.c.l.b16 %v97
    %v137 = vunpack.c.l.b16 %v98
    %v138 = vpack.c.b16 %v123, %v122
    %v139 = vpack.c.b16 %v125, %v124
    %v140 = vpack.c.b16 %v127, %v126
    %v141 = vpack.c.b16 %v129, %v128
    %v142 = vpack.c.b16 %v131, %v130
    %v143 = vpack.c.b16 %v133, %v132
    %v144 = vpack.c.b16 %v135, %v134
    %v145 = vpack.c.b16 %v137, %v136
    %154 = vmatprep.subr.bf16.mxu0 0
    %155 = vmatpush1.bf16.msra.mxu0 %v138
    %156 = vmatprep.subr.bf16.mxu0 0
    %157 = vmatpush1.bf16.msra.mxu0 %v139
    %158 = vmatprep.subr.bf16.mxu0 0
    %159 = vmatpush1.bf16.msra.mxu0 %v140
    %160 = vmatprep.subr.bf16.mxu0 0
    %161 = vmatpush1.bf16.msra.mxu0 %v141
    %162 = vmatprep.subr.bf16.mxu0 0
    %163 = vmatpush1.bf16.msra.mxu0 %v142
    %164 = vmatprep.subr.bf16.mxu0 0
    %165 = vmatpush1.bf16.msra.mxu0 %v143
    %166 = vmatprep.subr.bf16.mxu0 0
    %167 = vmatpush1.bf16.msra.mxu0 %v144
    %168 = vmatprep.subr.bf16.mxu0 0
    %169 = vmatpush1.bf16.msra.mxu0 %v145
    %170 = vmatprep.subr.bf16.mxu0 0
    %171 = vmatpush1.bf16.msra.mxu0 0
    %172 = vmatprep.subr.bf16.mxu0 0
    %173 = vmatpush1.bf16.msra.mxu0 0
    %174 = vmatprep.subr.bf16.mxu0 0
    %175 = vmatpush1.bf16.msra.mxu0 0
    %176 = vmatprep.subr.bf16.mxu0 0
    %177 = vmatpush1.bf16.msra.mxu0 0
    %178 = vmatprep.subr.bf16.mxu0 0
    %179 = vmatpush1.bf16.msra.mxu0 0
    %180 = vmatprep.subr.bf16.mxu0 0
    %181 = vmatpush1.bf16.msra.mxu0 0
    %182 = vmatprep.subr.bf16.mxu0 0
    %183 = vmatpush1.bf16.msra.mxu0 0
    %184 = vmatprep.subr.bf16.mxu0 0
    %185 = vmatpush1.bf16.msra.mxu0 0
    %186 = vmatprep.mubr.bf16.mxu0 0
    %187 = vmatmul.mubr.bf16.gmra.mrb[0].mxu0 %v82
    %v188 = vpop.f32.mrb[0].mxu0
    %v189 = vadd.f32 %v104, %v188
    %v190 = vpop.f32.mrb[0].mxu0
    %v191 = vpop.f32.mrb[0].mxu0
    %v192 = vpop.f32.mrb[0].mxu0
    %193 = vdwg.mxu0
    %v194 = vmax.f32 %v189, 0.0
    %v195 = vpack.c.bf16 %v194, %v194
    %v196 = vld [vmem:[#allocation7] sm:$0xff]
    %v197 = vld [vmem:[#allocation7 + $0x8] sm:$0xf]
    %v198 = vld [vmem:[#allocation7 + $0xc] sm:$0xff]
    %v199 = vld [vmem:[#allocation7 + $0x14] sm:$0xf]
    %v200 = vld [vmem:[#allocation7 + $0x18] sm:$0xff]
    %v201 = vld [vmem:[#allocation7 + $0x20] sm:$0xf]
    %v202 = vld [vmem:[#allocation7 + $0x24] sm:$0xff]
    %v203 = vld [vmem:[#allocation7 + $0x2c] sm:$0xf]
    %v204 = vld [vmem:[#allocation7 + $0x30] sm:$0xff]
    %v205 = vld [vmem:[#allocation7 + $0x38] sm:$0xf]
    %v206 = vld [vmem:[#allocation7 + $0x3c] sm:$0xff]
    %v207 = vld [vmem:[#allocation7 + $0x44] sm:$0xf]
    %v208 = vld [vmem:[#allocation7 + $0x48] sm:$0xff]
    %v209 = vld [vmem:[#allocation7 + $0x50] sm:$0xf]
    %v210 = vld [vmem:[#allocation7 + $0x54] sm:$0xff]
    %v211 = vld [vmem:[#allocation7 + $0x5c] sm:$0xf]
    %v212 = vld [vmem:[#allocation7 + $0x60] sm:$0xff]
    %v213 = vld [vmem:[#allocation7 + $0x68] sm:$0xf]
    %v214 = vld [vmem:[#allocation7 + $0x6c] sm:$0xff]
    %v215 = vld [vmem:[#allocation7 + $0x74] sm:$0xf]
    %v216 = vld [vmem:[#allocation7 + $0x78] sm:$0xff]
    %v217 = vld [vmem:[#allocation7 + $0x80] sm:$0xf]
    %v218 = vld [vmem:[#allocation7 + $0x84] sm:$0xff]
    %v219 = vld [vmem:[#allocation7 + $0x8c] sm:$0xf]
    %v220 = vld [vmem:[#allocation7 + $0x90] sm:$0xff]
    %v221 = vld [vmem:[#allocation7 + $0x98] sm:$0xf]
    %v222 = vld [vmem:[#allocation7 + $0x9c] sm:$0xff]
    %v223 = vld [vmem:[#allocation7 + $0xa4] sm:$0xf]
    %v224 = vld [vmem:[#allocation7 + $0xa8] sm:$0xff]
    %v225 = vld [vmem:[#allocation7 + $0xb0] sm:$0xf]
    %v226 = vld [vmem:[#allocation7 + $0xb4] sm:$0xff]
    %v227 = vld [vmem:[#allocation7 + $0xbc] sm:$0xf]
    %v228 = vld [vmem:[%s4] sm:$0x7]
    %v230 = vlaneseq
    %v231 = vshrl.u32 %v230, 7
    %v232 = vsub.s32 0, %v231
    %v233 = vrot.slane %v228, %v232
    %v234 = vlaneseq
    %v235 = vshrl.u32 %v234, 7
    %v236 = vsub.s32 1, %v235
    %v237 = vrot.slane %v228, %v236
    %v238 = vlaneseq
    %v239 = vshrl.u32 %v238, 7
    %v240 = vsub.s32 2, %v239
    %v241 = vrot.slane %v228, %v240
    %v277 = vunpack.c.l.b16 %v196
    %v278 = vunpack.c.h.b16 %v196
    %v279 = vunpack.c.l.b16 %v197
    %v280 = vunpack.c.l.b16 %v198
    %v281 = vunpack.c.h.b16 %v198
    %v282 = vunpack.c.l.b16 %v199
    %v283 = vunpack.c.l.b16 %v200
    %v284 = vunpack.c.h.b16 %v200
    %v285 = vunpack.c.l.b16 %v201
    %v286 = vunpack.c.l.b16 %v202
    %v287 = vunpack.c.h.b16 %v202
    %v288 = vunpack.c.l.b16 %v203
    %v289 = vunpack.c.l.b16 %v204
    %v290 = vunpack.c.h.b16 %v204
    %v291 = vunpack.c.l.b16 %v205
    %v292 = vunpack.c.l.b16 %v206
    %v293 = vunpack.c.h.b16 %v206
    %v294 = vunpack.c.l.b16 %v207
    %v295 = vunpack.c.l.b16 %v208
    %v296 = vunpack.c.h.b16 %v208
    %v297 = vunpack.c.l.b16 %v209
    %v298 = vunpack.c.l.b16 %v210
    %v299 = vunpack.c.h.b16 %v210
    %v300 = vunpack.c.l.b16 %v211
    %v301 = vunpack.c.l.b16 %v212
    %v302 = vunpack.c.h.b16 %v212
    %v303 = vunpack.c.l.b16 %v213
    %v304 = vunpack.c.l.b16 %v214
    %v305 = vunpack.c.h.b16 %v214
    %v306 = vunpack.c.l.b16 %v215
    %v307 = vunpack.c.l.b16 %v216
    %v308 = vunpack.c.h.b16 %v216
    %v309 = vunpack.c.l.b16 %v217
    %v310 = vunpack.c.l.b16 %v218
    %v311 = vunpack.c.h.b16 %v218
    %v312 = vunpack.c.l.b16 %v219
    %v313 = vunpack.c.l.b16 %v220
    %v314 = vunpack.c.h.b16 %v220
    %v315 = vunpack.c.l.b16 %v221
    %v316 = vunpack.c.l.b16 %v222
    %v317 = vunpack.c.h.b16 %v222
    %v318 = vunpack.c.l.b16 %v223
    %v319 = vunpack.c.l.b16 %v224
    %v320 = vunpack.c.h.b16 %v224
    %v321 = vunpack.c.l.b16 %v225
    %v322 = vunpack.c.l.b16 %v226
    %v323 = vunpack.c.h.b16 %v226
    %v324 = vunpack.c.l.b16 %v227
    %v325 = vpack.c.b16 %v280, %v277
    %v326 = vpack.c.b16 %v281, %v278
    %v327 = vpack.c.b16 %v282, %v279
    %v328 = vpack.c.b16 %v286, %v283
    %v329 = vpack.c.b16 %v287, %v284
    %v330 = vpack.c.b16 %v288, %v285
    %v331 = vpack.c.b16 %v292, %v289
    %v332 = vpack.c.b16 %v293, %v290
    %v333 = vpack.c.b16 %v294, %v291
    %v334 = vpack.c.b16 %v298, %v295
    %v335 = vpack.c.b16 %v299, %v296
    %v336 = vpack.c.b16 %v300, %v297
    %v337 = vpack.c.b16 %v304, %v301
    %v338 = vpack.c.b16 %v305, %v302
    %v339 = vpack.c.b16 %v306, %v303
    %v340 = vpack.c.b16 %v310, %v307
    %v341 = vpack.c.b16 %v311, %v308
    %v342 = vpack.c.b16 %v312, %v309
    %v343 = vpack.c.b16 %v316, %v313
    %v344 = vpack.c.b16 %v317, %v314
    %v345 = vpack.c.b16 %v318, %v315
    %v346 = vpack.c.b16 %v322, %v319
    %v347 = vpack.c.b16 %v323, %v320
    %v348 = vpack.c.b16 %v324, %v321
    %373 = vmatprep.subr.bf16.mxu0 %v326
    %374 = vmatpush1.bf16.msra.mxu0 %v325
    %375 = vmatprep.subr.bf16.mxu0 %v329
    %376 = vmatpush1.bf16.msra.mxu0 %v328
    %377 = vmatprep.subr.bf16.mxu0 %v332
    %378 = vmatpush1.bf16.msra.mxu0 %v331
    %379 = vmatprep.subr.bf16.mxu0 %v335
    %380 = vmatpush1.bf16.msra.mxu0 %v334
    %381 = vmatprep.subr.bf16.mxu0 %v338
    %382 = vmatpush1.bf16.msra.mxu0 %v337
    %383 = vmatprep.subr.bf16.mxu0 %v341
    %384 = vmatpush1.bf16.msra.mxu0 %v340
    %385 = vmatprep.subr.bf16.mxu0 %v344
    %386 = vmatpush1.bf16.msra.mxu0 %v343
    %387 = vmatprep.subr.bf16.mxu0 %v347
    %388 = vmatpush1.bf16.msra.mxu0 %v346
    %389 = vmatprep.subr.bf16.mxu0 0
    %390 = vmatpush1.bf16.msra.mxu0 0
    %391 = vmatprep.subr.bf16.mxu0 0
    %392 = vmatpush1.bf16.msra.mxu0 0
    %393 = vmatprep.subr.bf16.mxu0 0
    %394 = vmatpush1.bf16.msra.mxu0 0
    %395 = vmatprep.subr.bf16.mxu0 0
    %396 = vmatpush1.bf16.msra.mxu0 0
    %397 = vmatprep.subr.bf16.mxu0 0
    %398 = vmatpush1.bf16.msra.mxu0 0
    %399 = vmatprep.subr.bf16.mxu0 0
    %400 = vmatpush1.bf16.msra.mxu0 0
    %401 = vmatprep.subr.bf16.mxu0 0
    %402 = vmatpush1.bf16.msra.mxu0 0
    %403 = vmatprep.subr.bf16.mxu0 0
    %404 = vmatpush1.bf16.msra.mxu0 0
    %405 = vmatprep.mubr.bf16.mxu0 0
    %406 = vmatmul.mubr.bf16.gmra.mrb[0].mxu0 %v195
    %v407 = vpop.f32.mrb[0].mxu0
    %v408 = vadd.f32 %v233, %v407
    %v409 = vpop.f32.mrb[0].mxu0
    %v410 = vadd.f32 %v237, %v409
    %v411 = vpop.f32.mrb[0].mxu0
    %v412 = vpop.f32.mrb[0].mxu0
    %413 = vdwg.mxu0
    %414 = vmatprep.subr.bf16.mxu0 0
    %415 = vmatpush1.bf16.msra.mxu0 %v327
    %416 = vmatprep.subr.bf16.mxu0 0
    %417 = vmatpush1.bf16.msra.mxu0 %v330
    %418 = vmatprep.subr.bf16.mxu0 0
    %419 = vmatpush1.bf16.msra.mxu0 %v333
    %420 = vmatprep.subr.bf16.mxu0 0
    %421 = vmatpush1.bf16.msra.mxu0 %v336
    %422 = vmatprep.subr.bf16.mxu0 0
    %423 = vmatpush1.bf16.msra.mxu0 %v339
    %424 = vmatprep.subr.bf16.mxu0 0
    %425 = vmatpush1.bf16.msra.mxu0 %v342
    %426 = vmatprep.subr.bf16.mxu0 0
    %427 = vmatpush1.bf16.msra.mxu0 %v345
    %428 = vmatprep.subr.bf16.mxu0 0
    %429 = vmatpush1.bf16.msra.mxu0 %v348
    %430 = vmatprep.subr.bf16.mxu0 0
    %431 = vmatpush1.bf16.msra.mxu0 0
    %432 = vmatprep.subr.bf16.mxu0 0
    %433 = vmatpush1.bf16.msra.mxu0 0
    %434 = vmatprep.subr.bf16.mxu0 0
    %435 = vmatpush1.bf16.msra.mxu0 0
    %436 = vmatprep.subr.bf16.mxu0 0
    %437 = vmatpush1.bf16.msra.mxu0 0
    %438 = vmatprep.subr.bf16.mxu0 0
    %439 = vmatpush1.bf16.msra.mxu0 0
    %440 = vmatprep.subr.bf16.mxu0 0
    %441 = vmatpush1.bf16.msra.mxu0 0
    %442 = vmatprep.subr.bf16.mxu0 0
    %443 = vmatpush1.bf16.msra.mxu0 0
    %444 = vmatprep.subr.bf16.mxu0 0
    %445 = vmatpush1.bf16.msra.mxu0 0
    %446 = vmatprep.mubr.bf16.mxu0 0
    %447 = vmatmul.mubr.bf16.gmra.mrb[0].mxu0 %v195
    %v448 = vpop.f32.mrb[0].mxu0
    %v449 = vadd.f32 %v241, %v448
    %v450 = vpop.f32.mrb[0].mxu0
    %v451 = vpop.f32.mrb[0].mxu0
    %v452 = vpop.f32.mrb[0].mxu0
    %453 = vdwg.mxu0
    %v454 = vxor.u32 %v408, 2147483648
    %v455 = vmul.f32 %v454, 1.442695
    %v456 = vpow.pop %v455
    %v457 = vadd.f32 %v456, 1.0
    %v458 = vrcp.pop %v457
    %v459 = vmul.f32 1.0, %v458
    %v460 = vmax.f32 %v410, 0.0
    %v461 = vsub.f32 %v460, %v449
    %v462 = vmul.f32 %v459, %v461
    %v463 = vadd.f32 %v449, %v462
    %v464 = vpack.c.bf16 %v463, %v463
    %s465 = scalar_lea.vmem [#allocation7], 192
    %v466 = vld [vmem:[%s465] sm:$0xff]
    %v467 = vld [vmem:[%s465 + $0x8] sm:$0xf]
    %v468 = vld [vmem:[%s465 + $0xc] sm:$0xff]
    %v469 = vld [vmem:[%s465 + $0x14] sm:$0xf]
    %v470 = vld [vmem:[%s465 + $0x18] sm:$0xff]
    %v471 = vld [vmem:[%s465 + $0x20] sm:$0xf]
    %v472 = vld [vmem:[%s465 + $0x24] sm:$0xff]
    %v473 = vld [vmem:[%s465 + $0x2c] sm:$0xf]
    %v474 = vld [vmem:[%s465 + $0x30] sm:$0xff]
    %v475 = vld [vmem:[%s465 + $0x38] sm:$0xf]
    %v476 = vld [vmem:[%s465 + $0x3c] sm:$0xff]
    %v477 = vld [vmem:[%s465 + $0x44] sm:$0xf]
    %v478 = vld [vmem:[%s465 + $0x48] sm:$0xff]
    %v479 = vld [vmem:[%s465 + $0x50] sm:$0xf]
    %v480 = vld [vmem:[%s465 + $0x54] sm:$0xff]
    %v481 = vld [vmem:[%s465 + $0x5c] sm:$0xf]
    %v482 = vld [vmem:[%s465 + $0x60] sm:$0xff]
    %v483 = vld [vmem:[%s465 + $0x68] sm:$0xf]
    %v484 = vld [vmem:[%s465 + $0x6c] sm:$0xff]
    %v485 = vld [vmem:[%s465 + $0x74] sm:$0xf]
    %v486 = vld [vmem:[%s465 + $0x78] sm:$0xff]
    %v487 = vld [vmem:[%s465 + $0x80] sm:$0xf]
    %v488 = vld [vmem:[%s465 + $0x84] sm:$0xff]
    %v489 = vld [vmem:[%s465 + $0x8c] sm:$0xf]
    %v490 = vld [vmem:[%s465 + $0x90] sm:$0xff]
    %v491 = vld [vmem:[%s465 + $0x98] sm:$0xf]
    %v492 = vld [vmem:[%s465 + $0x9c] sm:$0xff]
    %v493 = vld [vmem:[%s465 + $0xa4] sm:$0xf]
    %v494 = vld [vmem:[%s465 + $0xa8] sm:$0xff]
    %v495 = vld [vmem:[%s465 + $0xb0] sm:$0xf]
    %v496 = vld [vmem:[%s465 + $0xb4] sm:$0xff]
    %v497 = vld [vmem:[%s465 + $0xbc] sm:$0xf]
    %s498 = scalar_lea.vmem %s4, 3
    %v499 = vld [vmem:[%s498] sm:$0x7]
    %v501 = vlaneseq
    %v502 = vshrl.u32 %v501, 7
    %v503 = vsub.s32 0, %v502
    %v504 = vrot.slane %v499, %v503
    %v505 = vlaneseq
    %v506 = vshrl.u32 %v505, 7
    %v507 = vsub.s32 1, %v506
    %v508 = vrot.slane %v499, %v507
    %v509 = vlaneseq
    %v510 = vshrl.u32 %v509, 7
    %v511 = vsub.s32 2, %v510
    %v512 = vrot.slane %v499, %v511
    %v548 = vunpack.c.l.b16 %v466
    %v549 = vunpack.c.h.b16 %v466
    %v550 = vunpack.c.l.b16 %v467
    %v551 = vunpack.c.l.b16 %v468
    %v552 = vunpack.c.h.b16 %v468
    %v553 = vunpack.c.l.b16 %v469
    %v554 = vunpack.c.l.b16 %v470
    %v555 = vunpack.c.h.b16 %v470
    %v556 = vunpack.c.l.b16 %v471
    %v557 = vunpack.c.l.b16 %v472
    %v558 = vunpack.c.h.b16 %v472
    %v559 = vunpack.c.l.b16 %v473
    %v560 = vunpack.c.l.b16 %v474
    %v561 = vunpack.c.h.b16 %v474
    %v562 = vunpack.c.l.b16 %v475
    %v563 = vunpack.c.l.b16 %v476
    %v564 = vunpack.c.h.b16 %v476
    %v565 = vunpack.c.l.b16 %v477
    %v566 = vunpack.c.l.b16 %v478
    %v567 = vunpack.c.h.b16 %v478
    %v568 = vunpack.c.l.b16 %v479
    %v569 = vunpack.c.l.b16 %v480
    %v570 = vunpack.c.h.b16 %v480
    %v571 = vunpack.c.l.b16 %v481
    %v572 = vunpack.c.l.b16 %v482
    %v573 = vunpack.c.h.b16 %v482
    %v574 = vunpack.c.l.b16 %v483
    %v575 = vunpack.c.l.b16 %v484
    %v576 = vunpack.c.h.b16 %v484
    %v577 = vunpack.c.l.b16 %v485
    %v578 = vunpack.c.l.b16 %v486
    %v579 = vunpack.c.h.b16 %v486
    %v580 = vunpack.c.l.b16 %v487
    %v581 = vunpack.c.l.b16 %v488
    %v582 = vunpack.c.h.b16 %v488
    %v583 = vunpack.c.l.b16 %v489
    %v584 = vunpack.c.l.b16 %v490
    %v585 = vunpack.c.h.b16 %v490
    %v586 = vunpack.c.l.b16 %v491
    %v587 = vunpack.c.l.b16 %v492
    %v588 = vunpack.c.h.b16 %v492
    %v589 = vunpack.c.l.b16 %v493
    %v590 = vunpack.c.l.b16 %v494
    %v591 = vunpack.c.h.b16 %v494
    %v592 = vunpack.c.l.b16 %v495
    %v593 = vunpack.c.l.b16 %v496
    %v594 = vunpack.c.h.b16 %v496
    %v595 = vunpack.c.l.b16 %v497
    %v596 = vpack.c.b16 %v551, %v548
    %v597 = vpack.c.b16 %v552, %v549
    %v598 = vpack.c.b16 %v553, %v550
    %v599 = vpack.c.b16 %v557, %v554
    %v600 = vpack.c.b16 %v558, %v555
    %v601 = vpack.c.b16 %v559, %v556
    %v602 = vpack.c.b16 %v563, %v560
    %v603 = vpack.c.b16 %v564, %v561
    %v604 = vpack.c.b16 %v565, %v562
    %v605 = vpack.c.b16 %v569, %v566
    %v606 = vpack.c.b16 %v570, %v567
    %v607 = vpack.c.b16 %v571, %v568
    %v608 = vpack.c.b16 %v575, %v572
    %v609 = vpack.c.b16 %v576, %v573
    %v610 = vpack.c.b16 %v577, %v574
    %v611 = vpack.c.b16 %v581, %v578
    %v612 = vpack.c.b16 %v582, %v579
    %v613 = vpack.c.b16 %v583, %v580
    %v614 = vpack.c.b16 %v587, %v584
    %v615 = vpack.c.b16 %v588, %v585
    %v616 = vpack.c.b16 %v589, %v586
    %v617 = vpack.c.b16 %v593, %v590
    %v618 = vpack.c.b16 %v594, %v591
    %v619 = vpack.c.b16 %v595, %v592
    %644 = vmatprep.subr.bf16.mxu0 %v597
    %645 = vmatpush1.bf16.msra.mxu0 %v596
    %646 = vmatprep.subr.bf16.mxu0 %v600
    %647 = vmatpush1.bf16.msra.mxu0 %v599
    %648 = vmatprep.subr.bf16.mxu0 %v603
    %649 = vmatpush1.bf16.msra.mxu0 %v602
    %650 = vmatprep.subr.bf16.mxu0 %v606
    %651 = vmatpush1.bf16.msra.mxu0 %v605
    %652 = vmatprep.subr.bf16.mxu0 %v609
    %653 = vmatpush1.bf16.msra.mxu0 %v608
    %654 = vmatprep.subr.bf16.mxu0 %v612
    %655 = vmatpush1.bf16.msra.mxu0 %v611
    %656 = vmatprep.subr.bf16.mxu0 %v615
    %657 = vmatpush1.bf16.msra.mxu0 %v614
    %658 = vmatprep.subr.bf16.mxu0 %v618
    %659 = vmatpush1.bf16.msra.mxu0 %v617
    %660 = vmatprep.subr.bf16.mxu0 0
    %661 = vmatpush1.bf16.msra.mxu0 0
    %662 = vmatprep.subr.bf16.mxu0 0
    %663 = vmatpush1.bf16.msra.mxu0 0
    %664 = vmatprep.subr.bf16.mxu0 0
    %665 = vmatpush1.bf16.msra.mxu0 0
    %666 = vmatprep.subr.bf16.mxu0 0
    %667 = vmatpush1.bf16.msra.mxu0 0
    %668 = vmatprep.subr.bf16.mxu0 0
    %669 = vmatpush1.bf16.msra.mxu0 0
    %670 = vmatprep.subr.bf16.mxu0 0
    %671 = vmatpush1.bf16.msra.mxu0 0
    %672 = vmatprep.subr.bf16.mxu0 0
    %673 = vmatpush1.bf16.msra.mxu0 0
    %674 = vmatprep.subr.bf16.mxu0 0
    %675 = vmatpush1.bf16.msra.mxu0 0
    %676 = vmatprep.mubr.bf16.mxu0 0
    %677 = vmatmul.mubr.bf16.gmra.mrb[0].mxu0 %v464
    %v678 = vpop.f32.mrb[0].mxu0
    %v679 = vadd.f32 %v504, %v678
    %v680 = vpop.f32.mrb[0].mxu0
    %v681 = vadd.f32 %v508, %v680
    %v682 = vpop.f32.mrb[0].mxu0
    %v683 = vpop.f32.mrb[0].mxu0
    %684 = vdwg.mxu0
    %685 = vmatprep.subr.bf16.mxu0 0
    %686 = vmatpush1.bf16.msra.mxu0 %v598
    %687 = vmatprep.subr.bf16.mxu0 0
    %688 = vmatpush1.bf16.msra.mxu0 %v601
    %689 = vmatprep.subr.bf16.mxu0 0
    %690 = vmatpush1.bf16.msra.mxu0 %v604
    %691 = vmatprep.subr.bf16.mxu0 0
    %692 = vmatpush1.bf16.msra.mxu0 %v607
    %693 = vmatprep.subr.bf16.mxu0 0
    %694 = vmatpush1.bf16.msra.mxu0 %v610
    %695 = vmatprep.subr.bf16.mxu0 0
    %696 = vmatpush1.bf16.msra.mxu0 %v613
    %697 = vmatprep.subr.bf16.mxu0 0
    %698 = vmatpush1.bf16.msra.mxu0 %v616
    %699 = vmatprep.subr.bf16.mxu0 0
    %700 = vmatpush1.bf16.msra.mxu0 %v619
    %701 = vmatprep.subr.bf16.mxu0 0
    %702 = vmatpush1.bf16.msra.mxu0 0
    %703 = vmatprep.subr.bf16.mxu0 0
    %704 = vmatpush1.bf16.msra.mxu0 0
    %705 = vmatprep.subr.bf16.mxu0 0
    %706 = vmatpush1.bf16.msra.mxu0 0
    %707 = vmatprep.subr.bf16.mxu0 0
    %708 = vmatpush1.bf16.msra.mxu0 0
    %709 = vmatprep.subr.bf16.mxu0 0
    %710 = vmatpush1.bf16.msra.mxu0 0
    %711 = vmatprep.subr.bf16.mxu0 0
    %712 = vmatpush1.bf16.msra.mxu0 0
    %713 = vmatprep.subr.bf16.mxu0 0
    %714 = vmatpush1.bf16.msra.mxu0 0
    %715 = vmatprep.subr.bf16.mxu0 0
    %716 = vmatpush1.bf16.msra.mxu0 0
    %717 = vmatprep.mubr.bf16.mxu0 0
    %718 = vmatmul.mubr.bf16.gmra.mrb[0].mxu0 %v464
    %v719 = vpop.f32.mrb[0].mxu0
    %v720 = vadd.f32 %v512, %v719
    %v721 = vpop.f32.mrb[0].mxu0
    %v722 = vpop.f32.mrb[0].mxu0
    %v723 = vpop.f32.mrb[0].mxu0
    %724 = vdwg.mxu0
    %v725 = vxor.u32 %v679, 2147483648
    %v726 = vmul.f32 %v725, 1.442695
    %v727 = vpow.pop %v726
    %v728 = vadd.f32 %v727, 1.0
    %v729 = vrcp.pop %v728
    %v730 = vmul.f32 1.0, %v729
    %v731 = vmax.f32 %v681, 0.0
    %v732 = vsub.f32 %v731, %v720
    %v733 = vmul.f32 %v730, %v732
    %v734 = vadd.f32 %v720, %v733
    %v735 = vpack.c.bf16 %v734, %v734
    %s736 = scalar_lea.vmem [#allocation7], 384
    %v737 = vld [vmem:[%s736] sm:$0xff]
    %v738 = vld [vmem:[%s736 + $0x8] sm:$0xf]
    %v739 = vld [vmem:[%s736 + $0xc] sm:$0xff]
    %v740 = vld [vmem:[%s736 + $0x14] sm:$0xf]
    %v741 = vld [vmem:[%s736 + $0x18] sm:$0xff]
    %v742 = vld [vmem:[%s736 + $0x20] sm:$0xf]
    %v743 = vld [vmem:[%s736 + $0x24] sm:$0xff]
    %v744 = vld [vmem:[%s736 + $0x2c] sm:$0xf]
    %v745 = vld [vmem:[%s736 + $0x30] sm:$0xff]
    %v746 = vld [vmem:[%s736 + $0x38] sm:$0xf]
    %v747 = vld [vmem:[%s736 + $0x3c] sm:$0xff]
    %v748 = vld [vmem:[%s736 + $0x44] sm:$0xf]
    %v749 = vld [vmem:[%s736 + $0x48] sm:$0xff]
    %v750 = vld [vmem:[%s736 + $0x50] sm:$0xf]
    %v751 = vld [vmem:[%s736 + $0x54] sm:$0xff]
    %v752 = vld [vmem:[%s736 + $0x5c] sm:$0xf]
    %v753 = vld [vmem:[%s736 + $0x60] sm:$0xff]
    %v754 = vld [vmem:[%s736 + $0x68] sm:$0xf]
    %v755 = vld [vmem:[%s736 + $0x6c] sm:$0xff]
    %v756 = vld [vmem:[%s736 + $0x74] sm:$0xf]
    %v757 = vld [vmem:[%s736 + $0x78] sm:$0xff]
    %v758 = vld [vmem:[%s736 + $0x80] sm:$0xf]
    %v759 = vld [vmem:[%s736 + $0x84] sm:$0xff]
    %v760 = vld [vmem:[%s736 + $0x8c] sm:$0xf]
    %v761 = vld [vmem:[%s736 + $0x90] sm:$0xff]
    %v762 = vld [vmem:[%s736 + $0x98] sm:$0xf]
    %v763 = vld [vmem:[%s736 + $0x9c] sm:$0xff]
    %v764 = vld [vmem:[%s736 + $0xa4] sm:$0xf]
    %v765 = vld [vmem:[%s736 + $0xa8] sm:$0xff]
    %v766 = vld [vmem:[%s736 + $0xb0] sm:$0xf]
    %v767 = vld [vmem:[%s736 + $0xb4] sm:$0xff]
    %v768 = vld [vmem:[%s736 + $0xbc] sm:$0xf]
    %s769 = scalar_lea.vmem %s4, 6
    %v770 = vld [vmem:[%s769] sm:$0x7]
    %v772 = vlaneseq
    %v773 = vshrl.u32 %v772, 7
    %v774 = vsub.s32 0, %v773
    %v775 = vrot.slane %v770, %v774
    %v776 = vlaneseq
    %v777 = vshrl.u32 %v776, 7
    %v778 = vsub.s32 1, %v777
    %v779 = vrot.slane %v770, %v778
    %v780 = vlaneseq
    %v781 = vshrl.u32 %v780, 7
    %v782 = vsub.s32 2, %v781
    %v783 = vrot.slane %v770, %v782
    %v819 = vunpack.c.l.b16 %v737
    %v820 = vunpack.c.h.b16 %v737
    %v821 = vunpack.c.l.b16 %v738
    %v822 = vunpack.c.l.b16 %v739
    %v823 = vunpack.c.h.b16 %v739
    %v824 = vunpack.c.l.b16 %v740
    %v825 = vunpack.c.l.b16 %v741
    %v826 = vunpack.c.h.b16 %v741
    %v827 = vunpack.c.l.b16 %v742
    %v828 = vunpack.c.l.b16 %v743
    %v829 = vunpack.c.h.b16 %v743
    %v830 = vunpack.c.l.b16 %v744
    %v831 = vunpack.c.l.b16 %v745
    %v832 = vunpack.c.h.b16 %v745
    %v833 = vunpack.c.l.b16 %v746
    %v834 = vunpack.c.l.b16 %v747
    %v835 = vunpack.c.h.b16 %v747
    %v836 = vunpack.c.l.b16 %v748
    %v837 = vunpack.c.l.b16 %v749
    %v838 = vunpack.c.h.b16 %v749
    %v839 = vunpack.c.l.b16 %v750
    %v840 = vunpack.c.l.b16 %v751
    %v841 = vunpack.c.h.b16 %v751
    %v842 = vunpack.c.l.b16 %v752
    %v843 = vunpack.c.l.b16 %v753
    %v844 = vunpack.c.h.b16 %v753
    %v845 = vunpack.c.l.b16 %v754
    %v846 = vunpack.c.l.b16 %v755
    %v847 = vunpack.c.h.b16 %v755
    %v848 = vunpack.c.l.b16 %v756
    %v849 = vunpack.c.l.b16 %v757
    %v850 = vunpack.c.h.b16 %v757
    %v851 = vunpack.c.l.b16 %v758
    %v852 = vunpack.c.l.b16 %v759
    %v853 = vunpack.c.h.b16 %v759
    %v854 = vunpack.c.l.b16 %v760
    %v855 = vunpack.c.l.b16 %v761
    %v856 = vunpack.c.h.b16 %v761
    %v857 = vunpack.c.l.b16 %v762
    %v858 = vunpack.c.l.b16 %v763
    %v859 = vunpack.c.h.b16 %v763
    %v860 = vunpack.c.l.b16 %v764
    %v861 = vunpack.c.l.b16 %v765
    %v862 = vunpack.c.h.b16 %v765
    %v863 = vunpack.c.l.b16 %v766
    %v864 = vunpack.c.l.b16 %v767
    %v865 = vunpack.c.h.b16 %v767
    %v866 = vunpack.c.l.b16 %v768
    %v867 = vpack.c.b16 %v822, %v819
    %v868 = vpack.c.b16 %v823, %v820
    %v869 = vpack.c.b16 %v824, %v821
    %v870 = vpack.c.b16 %v828, %v825
    %v871 = vpack.c.b16 %v829, %v826
    %v872 = vpack.c.b16 %v830, %v827
    %v873 = vpack.c.b16 %v834, %v831
    %v874 = vpack.c.b16 %v835, %v832
    %v875 = vpack.c.b16 %v836, %v833
    %v876 = vpack.c.b16 %v840, %v837
    %v877 = vpack.c.b16 %v841, %v838
    %v878 = vpack.c.b16 %v842, %v839
    %v879 = vpack.c.b16 %v846, %v843
    %v880 = vpack.c.b16 %v847, %v844
    %v881 = vpack.c.b16 %v848, %v845
    %v882 = vpack.c.b16 %v852, %v849
    %v883 = vpack.c.b16 %v853, %v850
    %v884 = vpack.c.b16 %v854, %v851
    %v885 = vpack.c.b16 %v858, %v855
    %v886 = vpack.c.b16 %v859, %v856
    %v887 = vpack.c.b16 %v860, %v857
    %v888 = vpack.c.b16 %v864, %v861
    %v889 = vpack.c.b16 %v865, %v862
    %v890 = vpack.c.b16 %v866, %v863
    %915 = vmatprep.subr.bf16.mxu0 %v868
    %916 = vmatpush1.bf16.msra.mxu0 %v867
    %917 = vmatprep.subr.bf16.mxu0 %v871
    %918 = vmatpush1.bf16.msra.mxu0 %v870
    %919 = vmatprep.subr.bf16.mxu0 %v874
    %920 = vmatpush1.bf16.msra.mxu0 %v873
    %921 = vmatprep.subr.bf16.mxu0 %v877
    %922 = vmatpush1.bf16.msra.mxu0 %v876
    %923 = vmatprep.subr.bf16.mxu0 %v880
    %924 = vmatpush1.bf16.msra.mxu0 %v879
    %925 = vmatprep.subr.bf16.mxu0 %v883
    %926 = vmatpush1.bf16.msra.mxu0 %v882
    %927 = vmatprep.subr.bf16.mxu0 %v886
    %928 = vmatpush1.bf16.msra.mxu0 %v885
    %929 = vmatprep.subr.bf16.mxu0 %v889
    %930 = vmatpush1.bf16.msra.mxu0 %v888
    %931 = vmatprep.subr.bf16.mxu0 0
    %932 = vmatpush1.bf16.msra.mxu0 0
    %933 = vmatprep.subr.bf16.mxu0 0
    %934 = vmatpush1.bf16.msra.mxu0 0
    %935 = vmatprep.subr.bf16.mxu0 0
    %936 = vmatpush1.bf16.msra.mxu0 0
    %937 = vmatprep.subr.bf16.mxu0 0
    %938 = vmatpush1.bf16.msra.mxu0 0
    %939 = vmatprep.subr.bf16.mxu0 0
    %940 = vmatpush1.bf16.msra.mxu0 0
    %941 = vmatprep.subr.bf16.mxu0 0
    %942 = vmatpush1.bf16.msra.mxu0 0
    %943 = vmatprep.subr.bf16.mxu0 0
    %944 = vmatpush1.bf16.msra.mxu0 0
    %945 = vmatprep.subr.bf16.mxu0 0
    %946 = vmatpush1.bf16.msra.mxu0 0
    %947 = vmatprep.mubr.bf16.mxu0 0
    %948 = vmatmul.mubr.bf16.gmra.mrb[0].mxu0 %v735
    %v949 = vpop.f32.mrb[0].mxu0
    %v950 = vadd.f32 %v775, %v949
    %v951 = vpop.f32.mrb[0].mxu0
    %v952 = vadd.f32 %v779, %v951
    %v953 = vpop.f32.mrb[0].mxu0
    %v954 = vpop.f32.mrb[0].mxu0
    %955 = vdwg.mxu0
    %956 = vmatprep.subr.bf16.mxu0 0
    %957 = vmatpush1.bf16.msra.mxu0 %v869
    %958 = vmatprep.subr.bf16.mxu0 0
    %959 = vmatpush1.bf16.msra.mxu0 %v872
    %960 = vmatprep.subr.bf16.mxu0 0
    %961 = vmatpush1.bf16.msra.mxu0 %v875
    %962 = vmatprep.subr.bf16.mxu0 0
    %963 = vmatpush1.bf16.msra.mxu0 %v878
    %964 = vmatprep.subr.bf16.mxu0 0
    %965 = vmatpush1.bf16.msra.mxu0 %v881
    %966 = vmatprep.subr.bf16.mxu0 0
    %967 = vmatpush1.bf16.msra.mxu0 %v884
    %968 = vmatprep.subr.bf16.mxu0 0
    %969 = vmatpush1.bf16.msra.mxu0 %v887
    %970 = vmatprep.subr.bf16.mxu0 0
    %971 = vmatpush1.bf16.msra.mxu0 %v890
    %972 = vmatprep.subr.bf16.mxu0 0
    %973 = vmatpush1.bf16.msra.mxu0 0
    %974 = vmatprep.subr.bf16.mxu0 0
    %975 = vmatpush1.bf16.msra.mxu0 0
    %976 = vmatprep.subr.bf16.mxu0 0
    %977 = vmatpush1.bf16.msra.mxu0 0
    %978 = vmatprep.subr.bf16.mxu0 0
    %979 = vmatpush1.bf16.msra.mxu0 0
    %980 = vmatprep.subr.bf16.mxu0 0
    %981 = vmatpush1.bf16.msra.mxu0 0
    %982 = vmatprep.subr.bf16.mxu0 0
    %983 = vmatpush1.bf16.msra.mxu0 0
    %984 = vmatprep.subr.bf16.mxu0 0
    %985 = vmatpush1.bf16.msra.mxu0 0
    %986 = vmatprep.subr.bf16.mxu0 0
    %987 = vmatpush1.bf16.msra.mxu0 0
    %988 = vmatprep.mubr.bf16.mxu0 0
    %989 = vmatmul.mubr.bf16.gmra.mrb[0].mxu0 %v735
    %v990 = vpop.f32.mrb[0].mxu0
    %v991 = vadd.f32 %v783, %v990
    %v992 = vpop.f32.mrb[0].mxu0
    %v993 = vpop.f32.mrb[0].mxu0
    %v994 = vpop.f32.mrb[0].mxu0
    %995 = vdwg.mxu0
    %v996 = vxor.u32 %v950, 2147483648
    %v997 = vmul.f32 %v996, 1.442695
    %v998 = vpow.pop %v997
    %v999 = vadd.f32 %v998, 1.0
    %v1000 = vrcp.pop %v999
    %v1001 = vmul.f32 1.0, %v1000
    %v1002 = vmax.f32 %v952, 0.0
    %v1003 = vsub.f32 %v1002, %v991
    %v1004 = vmul.f32 %v1001, %v1003
    %v1005 = vadd.f32 %v991, %v1004
    %v1006 = vpack.c.bf16 %v1005, %v1005
    %v1007 = vld [vmem:[#allocation8] sm:$0xf]
    %v1008 = vld [vmem:[#allocation8 + $0x4] sm:$0xf]
    %v1009 = vld [vmem:[#allocation8 + $0x8] sm:$0xf]
    %v1010 = vld [vmem:[#allocation8 + $0xc] sm:$0xf]
    %v1011 = vld [vmem:[#allocation8 + $0x10] sm:$0xf]
    %v1012 = vld [vmem:[#allocation8 + $0x14] sm:$0xf]
    %v1013 = vld [vmem:[#allocation8 + $0x18] sm:$0xf]
    %v1014 = vld [vmem:[#allocation8 + $0x1c] sm:$0xf]
    %v1015 = vld [vmem:[#allocation8 + $0x20] sm:$0xf]
    %v1016 = vld [vmem:[#allocation8 + $0x24] sm:$0xf]
    %v1017 = vld [vmem:[#allocation8 + $0x28] sm:$0xf]
    %v1018 = vld [vmem:[#allocation8 + $0x2c] sm:$0xf]
    %v1019 = vld [vmem:[#allocation8 + $0x30] sm:$0xf]
    %v1020 = vld [vmem:[#allocation8 + $0x34] sm:$0xf]
    %v1021 = vld [vmem:[#allocation8 + $0x38] sm:$0xf]
    %v1022 = vld [vmem:[#allocation8 + $0x3c] sm:$0xf]
    %v1023 = vld [vmem:[%s6] sm:$0x1]
    %v1025 = vlaneseq
    %v1026 = vshrl.u32 %v1025, 7
    %v1027 = vsub.s32 0, %v1026
    %v1028 = vrot.slane %v1023, %v1027
    %v1046 = vunpack.c.l.b16 %v1007
    %v1047 = vunpack.c.l.b16 %v1008
    %v1048 = vunpack.c.l.b16 %v1009
    %v1049 = vunpack.c.l.b16 %v1010
    %v1050 = vunpack.c.l.b16 %v1011
    %v1051 = vunpack.c.l.b16 %v1012
    %v1052 = vunpack.c.l.b16 %v1013
    %v1053 = vunpack.c.l.b16 %v1014
    %v1054 = vunpack.c.l.b16 %v1015
    %v1055 = vunpack.c.l.b16 %v1016
    %v1056 = vunpack.c.l.b16 %v1017
    %v1057 = vunpack.c.l.b16 %v1018
    %v1058 = vunpack.c.l.b16 %v1019
    %v1059 = vunpack.c.l.b16 %v1020
    %v1060 = vunpack.c.l.b16 %v1021
    %v1061 = vunpack.c.l.b16 %v1022
    %v1062 = vpack.c.b16 %v1047, %v1046
    %v1063 = vpack.c.b16 %v1049, %v1048
    %v1064 = vpack.c.b16 %v1051, %v1050
    %v1065 = vpack.c.b16 %v1053, %v1052
    %v1066 = vpack.c.b16 %v1055, %v1054
    %v1067 = vpack.c.b16 %v1057, %v1056
    %v1068 = vpack.c.b16 %v1059, %v1058
    %v1069 = vpack.c.b16 %v1061, %v1060
    %1078 = vmatprep.subr.bf16.mxu0 0
    %1079 = vmatpush1.bf16.msra.mxu0 %v1062
    %1080 = vmatprep.subr.bf16.mxu0 0
    %1081 = vmatpush1.bf16.msra.mxu0 %v1063
    %1082 = vmatprep.subr.bf16.mxu0 0
    %1083 = vmatpush1.bf16.msra.mxu0 %v1064
    %1084 = vmatprep.subr.bf16.mxu0 0
    %1085 = vmatpush1.bf16.msra.mxu0 %v1065
    %1086 = vmatprep.subr.bf16.mxu0 0
    %1087 = vmatpush1.bf16.msra.mxu0 %v1066
    %1088 = vmatprep.subr.bf16.mxu0 0
    %1089 = vmatpush1.bf16.msra.mxu0 %v1067
    %1090 = vmatprep.subr.bf16.mxu0 0
    %1091 = vmatpush1.bf16.msra.mxu0 %v1068
    %1092 = vmatprep.subr.bf16.mxu0 0
    %1093 = vmatpush1.bf16.msra.mxu0 %v1069
    %1094 = vmatprep.subr.bf16.mxu0 0
    %1095 = vmatpush1.bf16.msra.mxu0 0
    %1096 = vmatprep.subr.bf16.mxu0 0
    %1097 = vmatpush1.bf16.msra.mxu0 0
    %1098 = vmatprep.subr.bf16.mxu0 0
    %1099 = vmatpush1.bf16.msra.mxu0 0
    %1100 = vmatprep.subr.bf16.mxu0 0
    %1101 = vmatpush1.bf16.msra.mxu0 0
    %1102 = vmatprep.subr.bf16.mxu0 0
    %1103 = vmatpush1.bf16.msra.mxu0 0
    %1104 = vmatprep.subr.bf16.mxu0 0
    %1105 = vmatpush1.bf16.msra.mxu0 0
    %1106 = vmatprep.subr.bf16.mxu0 0
    %1107 = vmatpush1.bf16.msra.mxu0 0
    %1108 = vmatprep.subr.bf16.mxu0 0
    %1109 = vmatpush1.bf16.msra.mxu0 0
    %1110 = vmatprep.mubr.bf16.mxu0 0
    %1111 = vmatmul.mubr.bf16.gmra.mrb[0].mxu0 %v1006
    %v1112 = vpop.f32.mrb[0].mxu0
    %v1113 = vadd.f32 %v1028, %v1112
    %v1114 = vpop.f32.mrb[0].mxu0
    %v1115 = vpop.f32.mrb[0].mxu0
    %v1116 = vpop.f32.mrb[0].mxu0
    %1117 = vdwg.mxu0
    %v1118 = vlaneseq
    %v1119 = vand.u32 %v1118, 127
    %vm1120 = vcmp.lt.s32.totalorder %v1119, 10
    %v1121 = vsel %vm1120, %v1113, -1e+30
    %1122 = vmax.xlane.f32.xlu0 %v1121
    %v1123 = vpop.xlane.xlu0 %1122
    %v1124 = vsub.f32 %v1121, %v1123
    %v1125 = vmul.f32 %v1124, 1.442695
    %v1126 = vpow.pop %v1125
    %1127 = vadd.xlane.f32.xlu0 %v1126
    %v1128 = vpop.xlane.xlu0 %1127
    %v1129 = vrcp.pop %v1128
    %v1130 = vmul.f32 %v1126, %v1129
    %1131 = vst [vmem:[#allocation10] sm:$0xff] %v1130
    // Predicated region
    $region46: #{tpu_custom_call.1} parent=1 // pred_check
      _
    $region47: #{tpu_custom_call.1} parent=1 // pred_check_branch
      %1133 = sbr.rel (0) target = $region49
    $region48: #{tpu_custom_call.1} parent=1 // pred_region
      %s1135 = ssub.s32 128, 128
      %1136 = vsyncadd [#allocation4], %s1135
      %s1138 = sshll.u32 [#allocation10], 4
      %s1139 = int_to_ptr.vmem [resolvable:$true] %s1138
      %1141 = dma.vmem_to_hbm [thread:$0]  %s1139, 128, %s7, [#allocation4]
    $region49: #{tpu_custom_call.1} parent=1 // pred_fallthru
      _
    // Predicated region
    $region50: #{tpu_custom_call.1} parent=1 // pred_check
      _
    $region51: #{tpu_custom_call.1} parent=1 // pred_check_branch
      %1143 = sbr.rel (0) target = $region53
    $region52: #{tpu_custom_call.1} parent=1 // pred_region
      %1144 = dma.done [#allocation4], 128
    $region53: #{tpu_custom_call.1} parent=1 // pred_fallthru
      _
    %1145 = vsyncpa [#allocation3], 1
    %1146 = vsyncpa [#allocation6], 1
    %1147 = vsyncpa [#allocation9], 1
    %1148 = vsyncpa [#allocation4], 1

// kernel: tpu_custom_call.1
$region0: #{tpu_custom_call.1}
  #allocation0 [shape = 'u32[]', space=smem, size = 0x4, offset = 0x4, fixed_abs, tag = 'smem constant byte address 0x4 - core index']
  #allocation1 [shape = 'u32[144,128]{1,0:T(1,128)}', space=vmem, size = 0x12000, scoped, tag = 'internal scratch']
  %s0 = inlined_call_operand.hbm [shape: f32[8,128], index: 0, kind: input, shape index: {}]
  %s1 = inlined_call_operand.hbm [shape: bf16[128,128], index: 1, kind: input, shape index: {}]
  %s2 = inlined_call_operand.vmem [shape: f32[1,128], index: 2, kind: input, shape index: {}]
  %s3 = inlined_call_operand.hbm [shape: bf16[3,128,384], index: 3, kind: input, shape index: {}]
  %s4 = inlined_call_operand.vmem [shape: f32[3,1,384], index: 4, kind: input, shape index: {}]
  %s5 = inlined_call_operand.hbm [shape: bf16[128,128], index: 5, kind: input, shape index: {}]
  %s6 = inlined_call_operand.vmem [shape: f32[1,128], index: 6, kind: input, shape index: {}]
  %s7 = inlined_call_operand.hbm [shape: f32[8,128], index: 7, kind: output, shape index: {}]
  %s8 = sld [smem:[#allocation0]]
  $region54: #{tpu_custom_call.1} parent=0
    _
  %s10 = ssub.s32 1, %s8
  %s11 = scalar_select 0, %s10, %s8
  $region1: #{tpu_custom_call.1} parent=0
    #allocation2 [shape = 'u8[4096]{0}', space=vmem, size = 0x1000, scoped, tag = 'input window, operand 0, single buffered']
    #allocation3 [shape = 's32[1]{0}', space=sflag, size = 0x4, scoped, tag = 'scoped memory for tpu_custom_call.1']
    #allocation4 [shape = 's32[1]{0}', space=sflag, size = 0x4, scoped, tag = 'scoped memory for tpu_custom_call.1']
    #allocation5 [shape = 'u8[32768]{0}', space=vmem, size = 0x8000, scoped, tag = 'input window, operand 1, single buffered']
    #allocation6 [shape = 's32[1]{0}', space=sflag, size = 0x4, scoped, tag = 'scoped memory for tpu_custom_call.1']
    #allocation7 [shape = 'u8[294912]{0}', space=vmem, size = 0x48000, scoped, tag = 'input window, operand 3, single buffered']
    #allocation8 [shape = 'u8[32768]{0}', space=vmem, size = 0x8000, scoped, tag = 'input window, operand 5, single buffered']
    #allocation9 [shape = 's32[1]{0}', space=sflag, size = 0x4, scoped, tag = 'scoped memory for tpu_custom_call.1']
    #allocation10 [shape = 'u8[4096]{0}', space=vmem, size = 0x1000, scoped, tag = 'output window, operand 0, single buffered']
    %12 = vsyncpa [#allocation3], 0
    %13 = vsyncpa [#allocation6], 0
    %14 = vsyncpa [#allocation9], 0
    %15 = vsyncpa [#allocation4], 0
    // Predicated region
    $region2: #{tpu_custom_call.1} parent=1 // pred_check
      _
    $region3: #{tpu_custom_call.1} parent=1 // pred_check_branch
      %17 = sbr.rel (0) target = $region5
    $region4: #{tpu_custom_call.1} parent=1 // pred_region
      %s19 = ssub.s32 128, 128
      %20 = vsyncadd [#allocation3], %s19
      %s22 = sshll.u32 [#allocation2], 4
      %s23 = int_to_ptr.vmem [resolvable:$true] %s22
      %25 = dma.hbm_to_vmem [thread:$0]  %s0, 128, %s23, [#allocation3]
    $region5: #{tpu_custom_call.1} parent=1 // pred_fallthru
      _
    // Predicated region
    $region6: #{tpu_custom_call.1} parent=1 // pred_check
      _
    $region7: #{tpu_custom_call.1} parent=1 // pred_check_branch
      %27 = sbr.rel (0) target = $region9
    $region8: #{tpu_custom_call.1} parent=1 // pred_region
      %s29 = ssub.s32 1024, 1024
      %30 = vsyncadd [#allocation6], %s29
      %s31 = sshll.u32 [#allocation5], 4
      %s32 = int_to_ptr.vmem [resolvable:$true] %s31
      %37 = dma.hbm_to_vmem [thread:$0]  %s1, 1024, %s32, [#allocation6], 64, 64, 4
    $region9: #{tpu_custom_call.1} parent=1 // pred_fallthru
      _
    // Predicated region
    $region10: #{tpu_custom_call.1} parent=1 // pred_check
      _
    $region11: #{tpu_custom_call.1} parent=1 // pred_check_branch
      %39 = sbr.rel (0) target = $region13
    $region12: #{tpu_custom_call.1} parent=1 // pred_region
      _
    $region13: #{tpu_custom_call.1} parent=1 // pred_fallthru
      _
    // Predicated region
    $region14: #{tpu_custom_call.1} parent=1 // pred_check
      _
    $region15: #{tpu_custom_call.1} parent=1 // pred_check_branch
      %41 = sbr.rel (0) target = $region17
    $region16: #{tpu_custom_call.1} parent=1 // pred_region
      %s43 = ssub.s32 9216, 9216
      %44 = vsyncadd [#allocation6], %s43
      %s45 = sshll.u32 [#allocation7], 4
      %s46 = int_to_ptr.vmem [resolvable:$true] %s45
      %51 = dma.hbm_to_vmem [thread:$0]  %s3, 9216, %s46, [#allocation6], 192, 192, 12
    $region17: #{tpu_custom_call.1} parent=1 // pred_fallthru
      _
    // Predicated region
    $region18: #{tpu_custom_call.1} parent=1 // pred_check
      _
    $region19: #{tpu_custom_call.1} parent=1 // pred_check_branch
      %53 = sbr.rel (0) target = $region21
    $region20: #{tpu_custom_call.1} parent=1 // pred_region
      _
    $region21: #{tpu_custom_call.1} parent=1 // pred_fallthru
      _
    // Predicated region
    $region22: #{tpu_custom_call.1} parent=1 // pred_check
      _
    $region23: #{tpu_custom_call.1} parent=1 // pred_check_branch
      %55 = sbr.rel (0) target = $region25
    $region24: #{tpu_custom_call.1} parent=1 // pred_region
      %s57 = ssub.s32 1024, 1024
      %58 = vsyncadd [#allocation9], %s57
      %s59 = sshll.u32 [#allocation8], 4
      %s60 = int_to_ptr.vmem [resolvable:$true] %s59
      %65 = dma.hbm_to_vmem [thread:$0]  %s5, 1024, %s60, [#allocation9], 64, 64, 4
    $region25: #{tpu_custom_call.1} parent=1 // pred_fallthru
      _
    // Predicated region
    $region26: #{tpu_custom_call.1} parent=1 // pred_check
      _
    $region27: #{tpu_custom_call.1} parent=1 // pred_check_branch
      %67 = sbr.rel (0) target = $region29
    $region28: #{tpu_custom_call.1} parent=1 // pred_region
      _
    $region29: #{tpu_custom_call.1} parent=1 // pred_fallthru
      _
    // Predicated region
    $region30: #{tpu_custom_call.1} parent=1 // pred_check
      _
    $region31: #{tpu_custom_call.1} parent=1 // pred_check_branch
      %69 = sbr.rel (0) target = $region33
    $region32: #{tpu_custom_call.1} parent=1 // pred_region
      %70 = dma.done [#allocation3], 128
    $region33: #{tpu_custom_call.1} parent=1 // pred_fallthru
      _
    // Predicated region
    $region34: #{tpu_custom_call.1} parent=1 // pred_check
      _
    $region35: #{tpu_custom_call.1} parent=1 // pred_check_branch
      %72 = sbr.rel (0) target = $region37
    $region36: #{tpu_custom_call.1} parent=1 // pred_region
      %73 = dma.done [#allocation6], 1024
    $region37: #{tpu_custom_call.1} parent=1 // pred_fallthru
      _
    // Predicated region
    $region38: #{tpu_custom_call.1} parent=1 // pred_check
      _
    $region39: #{tpu_custom_call.1} parent=1 // pred_check_branch
      %75 = sbr.rel (0) target = $region41
    $region40: #{tpu_custom_call.1} parent=1 // pred_region
      %76 = dma.done [#allocation6], 9216
    $region41: #{tpu_custom_call.1} parent=1 // pred_fallthru
      _
    // Predicated region
    $region42: #{tpu_custom_call.1} parent=1 // pred_check
      _
    $region43: #{tpu_custom_call.1} parent=1 // pred_check_branch
      %78 = sbr.rel (0) target = $region45
    $region44: #{tpu_custom_call.1} parent=1 // pred_region
      %79 = dma.done [#allocation9], 1024
    $region45: #{tpu_custom_call.1} parent=1 // pred_fallthru
      _
    %v81 = vld [vmem:[#allocation2] sm:$0xff]
    %v82 = vpack.c.bf16 %v81, %v81
    %v83 = vld [vmem:[#allocation5] sm:$0xf]
    %v84 = vld [vmem:[#allocation5 + $0x4] sm:$0xf]
    %v85 = vld [vmem:[#allocation5 + $0x8] sm:$0xf]
    %v86 = vld [vmem:[#allocation5 + $0xc] sm:$0xf]
    %v87 = vld [vmem:[#allocation5 + $0x10] sm:$0xf]
    %v88 = vld [vmem:[#allocation5 + $0x14] sm:$0xf]
    %v89 = vld [vmem:[#allocation5 + $0x18] sm:$0xf]
    %v90 = vld [vmem:[#allocation5 + $0x1c] sm:$0xf]
    %v91 = vld [vmem:[#allocation5 + $0x20] sm:$0xf]
    %v92 = vld [vmem:[#allocation5 + $0x24] sm:$0xf]
    %v93 = vld [vmem:[#allocation5 + $0x28] sm:$0xf]
    %v94 = vld [vmem:[#allocation5 + $0x2c] sm:$0xf]
    %v95 = vld [vmem:[#allocation5 + $0x30] sm:$0xf]
    %v96 = vld [vmem:[#allocation5 + $0x34] sm:$0xf]
    %v97 = vld [vmem:[#allocation5 + $0x38] sm:$0xf]
    %v98 = vld [vmem:[#allocation5 + $0x3c] sm:$0xf]
    %v99 = vld [vmem:[%s2] sm:$0x1]
    %v101 = vlaneseq
    %v102 = vshrl.u32 %v101, 7
    %v103 = vsub.s32 0, %v102
    %v104 = vrot.slane %v99, %v103
    %v122 = vunpack.c.l.b16 %v83
    %v123 = vunpack.c.l.b16 %v84
    %v124 = vunpack.c.l.b16 %v85
    %v125 = vunpack.c.l.b16 %v86
    %v126 = vunpack.c.l.b16 %v87
    %v127 = vunpack.c.l.b16 %v88
    %v128 = vunpack.c.l.b16 %v89
    %v129 = vunpack.c.l.b16 %v90
    %v130 = vunpack.c.l.b16 %v91
    %v131 = vunpack.c.l.b16 %v92
    %v132 = vunpack.c.l.b16 %v93
    %v133 = vunpack.c.l.b16 %v94
    %v134 = vunpack.c.l.b16 %v95
    %v135 = vunpack.c.l.b16 %v96
    %v136 = vunpack.c.l.b16 %v97
    %v137 = vunpack.c.l.b16 %v98
    %v138 = vpack.c.b16 %v123, %v122
    %v139 = vpack.c.b16 %v125, %v124
    %v140 = vpack.c.b16 %v127, %v126
    %v141 = vpack.c.b16 %v129, %v128
    %v142 = vpack.c.b16 %v131, %v130
    %v143 = vpack.c.b16 %v133, %v132
    %v144 = vpack.c.b16 %v135, %v134
    %v145 = vpack.c.b16 %v137, %v136
    %154 = vmatprep.subr.bf16.mxu0 0
    %155 = vmatpush1.bf16.msra.mxu0 %v138
    %156 = vmatprep.subr.bf16.mxu0 0
    %157 = vmatpush1.bf16.msra.mxu0 %v139
    %158 = vmatprep.subr.bf16.mxu0 0
    %159 = vmatpush1.bf16.msra.mxu0 %v140
    %160 = vmatprep.subr.bf16.mxu0 0
    %161 = vmatpush1.bf16.msra.mxu0 %v141
    %162 = vmatprep.subr.bf16.mxu0 0
    %163 = vmatpush1.bf16.msra.mxu0 %v142
    %164 = vmatprep.subr.bf16.mxu0 0
    %165 = vmatpush1.bf16.msra.mxu0 %v143
    %166 = vmatprep.subr.bf16.mxu0 0
    %167 = vmatpush1.bf16.msra.mxu0 %v144
    %168 = vmatprep.subr.bf16.mxu0 0
    %169 = vmatpush1.bf16.msra.mxu0 %v145
    %170 = vmatprep.subr.bf16.mxu0 0
    %171 = vmatpush1.bf16.msra.mxu0 0
    %172 = vmatprep.subr.bf16.mxu0 0
    %173 = vmatpush1.bf16.msra.mxu0 0
    %174 = vmatprep.subr.bf16.mxu0 0
    %175 = vmatpush1.bf16.msra.mxu0 0
    %176 = vmatprep.subr.bf16.mxu0 0
    %177 = vmatpush1.bf16.msra.mxu0 0
    %178 = vmatprep.subr.bf16.mxu0 0
    %179 = vmatpush1.bf16.msra.mxu0 0
    %180 = vmatprep.subr.bf16.mxu0 0
    %181 = vmatpush1.bf16.msra.mxu0 0
    %182 = vmatprep.subr.bf16.mxu0 0
    %183 = vmatpush1.bf16.msra.mxu0 0
    %184 = vmatprep.subr.bf16.mxu0 0
    %185 = vmatpush1.bf16.msra.mxu0 0
    %186 = vmatprep.mubr.bf16.mxu0 0
    %187 = vmatmul.mubr.bf16.gmra.mrb[0].mxu0 %v82
    %v188 = vpop.f32.mrb[0].mxu0
    %v189 = vadd.f32 %v104, %v188
    %v190 = vpop.f32.mrb[0].mxu0
    %v191 = vpop.f32.mrb[0].mxu0
    %v192 = vpop.f32.mrb[0].mxu0
    %193 = vdwg.mxu0
    %v194 = vmax.f32 %v189, 0.0
    %v195 = vpack.c.bf16 %v194, %v194
    %v196 = vld [vmem:[#allocation7] sm:$0xff]
    %v197 = vld [vmem:[#allocation7 + $0x8] sm:$0xf]
    %v198 = vld [vmem:[#allocation7 + $0xc] sm:$0xff]
    %v199 = vld [vmem:[#allocation7 + $0x14] sm:$0xf]
    %v200 = vld [vmem:[#allocation7 + $0x18] sm:$0xff]
    %v201 = vld [vmem:[#allocation7 + $0x20] sm:$0xf]
    %v202 = vld [vmem:[#allocation7 + $0x24] sm:$0xff]
    %v203 = vld [vmem:[#allocation7 + $0x2c] sm:$0xf]
    %v204 = vld [vmem:[#allocation7 + $0x30] sm:$0xff]
    %v205 = vld [vmem:[#allocation7 + $0x38] sm:$0xf]
    %v206 = vld [vmem:[#allocation7 + $0x3c] sm:$0xff]
    %v207 = vld [vmem:[#allocation7 + $0x44] sm:$0xf]
    %v208 = vld [vmem:[#allocation7 + $0x48] sm:$0xff]
    %v209 = vld [vmem:[#allocation7 + $0x50] sm:$0xf]
    %v210 = vld [vmem:[#allocation7 + $0x54] sm:$0xff]
    %v211 = vld [vmem:[#allocation7 + $0x5c] sm:$0xf]
    %v212 = vld [vmem:[#allocation7 + $0x60] sm:$0xff]
    %v213 = vld [vmem:[#allocation7 + $0x68] sm:$0xf]
    %v214 = vld [vmem:[#allocation7 + $0x6c] sm:$0xff]
    %v215 = vld [vmem:[#allocation7 + $0x74] sm:$0xf]
    %v216 = vld [vmem:[#allocation7 + $0x78] sm:$0xff]
    %v217 = vld [vmem:[#allocation7 + $0x80] sm:$0xf]
    %v218 = vld [vmem:[#allocation7 + $0x84] sm:$0xff]
    %v219 = vld [vmem:[#allocation7 + $0x8c] sm:$0xf]
    %v220 = vld [vmem:[#allocation7 + $0x90] sm:$0xff]
    %v221 = vld [vmem:[#allocation7 + $0x98] sm:$0xf]
    %v222 = vld [vmem:[#allocation7 + $0x9c] sm:$0xff]
    %v223 = vld [vmem:[#allocation7 + $0xa4] sm:$0xf]
    %v224 = vld [vmem:[#allocation7 + $0xa8] sm:$0xff]
    %v225 = vld [vmem:[#allocation7 + $0xb0] sm:$0xf]
    %v226 = vld [vmem:[#allocation7 + $0xb4] sm:$0xff]
    %v227 = vld [vmem:[#allocation7 + $0xbc] sm:$0xf]
    %v228 = vld [vmem:[%s4] sm:$0x7]
    %v230 = vlaneseq
    %v231 = vshrl.u32 %v230, 7
    %v232 = vsub.s32 0, %v231
    %v233 = vrot.slane %v228, %v232
    %v234 = vlaneseq
    %v235 = vshrl.u32 %v234, 7
    %v236 = vsub.s32 1, %v235
    %v237 = vrot.slane %v228, %v236
    %v238 = vlaneseq
    %v239 = vshrl.u32 %v238, 7
    %v240 = vsub.s32 2, %v239
    %v241 = vrot.slane %v228, %v240
    %v277 = vunpack.c.l.b16 %v196
    %v278 = vunpack.c.h.b16 %v196
    %v279 = vunpack.c.l.b16 %v197
    %v280 = vunpack.c.l.b16 %v198
    %v281 = vunpack.c.h.b16 %v198
    %v282 = vunpack.c.l.b16 %v199
    %v283 = vunpack.c.l.b16 %v200
    %v284 = vunpack.c.h.b16 %v200
    %v285 = vunpack.c.l.b16 %v201
    %v286 = vunpack.c.l.b16 %v202
    %v287 = vunpack.c.h.b16 %v202
    %v288 = vunpack.c.l.b16 %v203
    %v289 = vunpack.c.l.b16 %v204
    %v290 = vunpack.c.h.b16 %v204
    %v291 = vunpack.c.l.b16 %v205
    %v292 = vunpack.c.l.b16 %v206
    %v293 = vunpack.c.h.b16 %v206
    %v294 = vunpack.c.l.b16 %v207
    %v295 = vunpack.c.l.b16 %v208
    %v296 = vunpack.c.h.b16 %v208
    %v297 = vunpack.c.l.b16 %v209
    %v298 = vunpack.c.l.b16 %v210
    %v299 = vunpack.c.h.b16 %v210
    %v300 = vunpack.c.l.b16 %v211
    %v301 = vunpack.c.l.b16 %v212
    %v302 = vunpack.c.h.b16 %v212
    %v303 = vunpack.c.l.b16 %v213
    %v304 = vunpack.c.l.b16 %v214
    %v305 = vunpack.c.h.b16 %v214
    %v306 = vunpack.c.l.b16 %v215
    %v307 = vunpack.c.l.b16 %v216
    %v308 = vunpack.c.h.b16 %v216
    %v309 = vunpack.c.l.b16 %v217
    %v310 = vunpack.c.l.b16 %v218
    %v311 = vunpack.c.h.b16 %v218
    %v312 = vunpack.c.l.b16 %v219
    %v313 = vunpack.c.l.b16 %v220
    %v314 = vunpack.c.h.b16 %v220
    %v315 = vunpack.c.l.b16 %v221
    %v316 = vunpack.c.l.b16 %v222
    %v317 = vunpack.c.h.b16 %v222
    %v318 = vunpack.c.l.b16 %v223
    %v319 = vunpack.c.l.b16 %v224
    %v320 = vunpack.c.h.b16 %v224
    %v321 = vunpack.c.l.b16 %v225
    %v322 = vunpack.c.l.b16 %v226
    %v323 = vunpack.c.h.b16 %v226
    %v324 = vunpack.c.l.b16 %v227
    %v325 = vpack.c.b16 %v280, %v277
    %v326 = vpack.c.b16 %v281, %v278
    %v327 = vpack.c.b16 %v282, %v279
    %v328 = vpack.c.b16 %v286, %v283
    %v329 = vpack.c.b16 %v287, %v284
    %v330 = vpack.c.b16 %v288, %v285
    %v331 = vpack.c.b16 %v292, %v289
    %v332 = vpack.c.b16 %v293, %v290
    %v333 = vpack.c.b16 %v294, %v291
    %v334 = vpack.c.b16 %v298, %v295
    %v335 = vpack.c.b16 %v299, %v296
    %v336 = vpack.c.b16 %v300, %v297
    %v337 = vpack.c.b16 %v304, %v301
    %v338 = vpack.c.b16 %v305, %v302
    %v339 = vpack.c.b16 %v306, %v303
    %v340 = vpack.c.b16 %v310, %v307
    %v341 = vpack.c.b16 %v311, %v308
    %v342 = vpack.c.b16 %v312, %v309
    %v343 = vpack.c.b16 %v316, %v313
    %v344 = vpack.c.b16 %v317, %v314
    %v345 = vpack.c.b16 %v318, %v315
    %v346 = vpack.c.b16 %v322, %v319
    %v347 = vpack.c.b16 %v323, %v320
    %v348 = vpack.c.b16 %v324, %v321
    %373 = vmatprep.subr.bf16.mxu0 %v326
    %374 = vmatpush1.bf16.msra.mxu0 %v325
    %375 = vmatprep.subr.bf16.mxu0 %v329
    %376 = vmatpush1.bf16.msra.mxu0 %v328
    %377 = vmatprep.subr.bf16.mxu0 %v332
    %378 = vmatpush1.bf16.msra.mxu0 %v331
    %379 = vmatprep.subr.bf16.mxu0 %v335
    %380 = vmatpush1.bf16.msra.mxu0 %v334
    %381 = vmatprep.subr.bf16.mxu0 %v338
    %382 = vmatpush1.bf16.msra.mxu0 %v337
    %383 = vmatprep.subr.bf16.mxu0 %v341
    %384 = vmatpush1.bf16.msra.mxu0 %v340
    %385 = vmatprep.subr.bf16.mxu0 %v344
    %386 = vmatpush1.bf16.msra.mxu0 %v343
    %387 = vmatprep.subr.bf16.mxu0 %v347
    %388 = vmatpush1.bf16.msra.mxu0 %v346
    %389 = vmatprep.subr.bf16.mxu0 0
    %390 = vmatpush1.bf16.msra.mxu0 0
    %391 = vmatprep.subr.bf16.mxu0 0
    %392 = vmatpush1.bf16.msra.mxu0 0
    %393 = vmatprep.subr.bf16.mxu0 0
    %394 = vmatpush1.bf16.msra.mxu0 0
    %395 = vmatprep.subr.bf16.mxu0 0
    %396 = vmatpush1.bf16.msra.mxu0 0
    %397 = vmatprep.subr.bf16.mxu0 0
    %398 = vmatpush1.bf16.msra.mxu0 0
    %399 = vmatprep.subr.bf16.mxu0 0
    %400 = vmatpush1.bf16.msra.mxu0 0
    %401 = vmatprep.subr.bf16.mxu0 0
    %402 = vmatpush1.bf16.msra.mxu0 0
    %403 = vmatprep.subr.bf16.mxu0 0
    %404 = vmatpush1.bf16.msra.mxu0 0
    %405 = vmatprep.mubr.bf16.mxu0 0
    %406 = vmatmul.mubr.bf16.gmra.mrb[0].mxu0 %v195
    %v407 = vpop.f32.mrb[0].mxu0
    %v408 = vadd.f32 %v233, %v407
    %v409 = vpop.f32.mrb[0].mxu0
    %v410 = vadd.f32 %v237, %v409
    %v411 = vpop.f32.mrb[0].mxu0
    %v412 = vpop.f32.mrb[0].mxu0
    %413 = vdwg.mxu0
    %414 = vmatprep.subr.bf16.mxu0 0
    %415 = vmatpush1.bf16.msra.mxu0 %v327
    %416 = vmatprep.subr.bf16.mxu0 0
    %417 = vmatpush1.bf16.msra.mxu0 %v330
    %418 = vmatprep.subr.bf16.mxu0 0
    %419 = vmatpush1.bf16.msra.mxu0 %v333
    %420 = vmatprep.subr.bf16.mxu0 0
    %421 = vmatpush1.bf16.msra.mxu0 %v336
    %422 = vmatprep.subr.bf16.mxu0 0
    %423 = vmatpush1.bf16.msra.mxu0 %v339
    %424 = vmatprep.subr.bf16.mxu0 0
    %425 = vmatpush1.bf16.msra.mxu0 %v342
    %426 = vmatprep.subr.bf16.mxu0 0
    %427 = vmatpush1.bf16.msra.mxu0 %v345
    %428 = vmatprep.subr.bf16.mxu0 0
    %429 = vmatpush1.bf16.msra.mxu0 %v348
    %430 = vmatprep.subr.bf16.mxu0 0
    %431 = vmatpush1.bf16.msra.mxu0 0
    %432 = vmatprep.subr.bf16.mxu0 0
    %433 = vmatpush1.bf16.msra.mxu0 0
    %434 = vmatprep.subr.bf16.mxu0 0
    %435 = vmatpush1.bf16.msra.mxu0 0
    %436 = vmatprep.subr.bf16.mxu0 0
    %437 = vmatpush1.bf16.msra.mxu0 0
    %438 = vmatprep.subr.bf16.mxu0 0
    %439 = vmatpush1.bf16.msra.mxu0 0
    %440 = vmatprep.subr.bf16.mxu0 0
    %441 = vmatpush1.bf16.msra.mxu0 0
    %442 = vmatprep.subr.bf16.mxu0 0
    %443 = vmatpush1.bf16.msra.mxu0 0
    %444 = vmatprep.subr.bf16.mxu0 0
    %445 = vmatpush1.bf16.msra.mxu0 0
    %446 = vmatprep.mubr.bf16.mxu0 0
    %447 = vmatmul.mubr.bf16.gmra.mrb[0].mxu0 %v195
    %v448 = vpop.f32.mrb[0].mxu0
    %v449 = vadd.f32 %v241, %v448
    %v450 = vpop.f32.mrb[0].mxu0
    %v451 = vpop.f32.mrb[0].mxu0
    %v452 = vpop.f32.mrb[0].mxu0
    %453 = vdwg.mxu0
    %v454 = vxor.u32 %v408, 2147483648
    %v455 = vmul.f32 %v454, 1.442695
    %v456 = vpow.pop %v455
    %v457 = vadd.f32 %v456, 1.0
    %v458 = vrcp.pop %v457
    %v459 = vmul.f32 1.0, %v458
    %v460 = vmax.f32 %v410, 0.0
    %v461 = vsub.f32 %v460, %v449
    %v462 = vmul.f32 %v459, %v461
    %v463 = vadd.f32 %v449, %v462
    %v464 = vpack.c.bf16 %v463, %v463
    %s465 = scalar_lea.vmem [#allocation7], 192
    %v466 = vld [vmem:[%s465] sm:$0xff]
    %v467 = vld [vmem:[%s465 + $0x8] sm:$0xf]
    %v468 = vld [vmem:[%s465 + $0xc] sm:$0xff]
    %v469 = vld [vmem:[%s465 + $0x14] sm:$0xf]
    %v470 = vld [vmem:[%s465 + $0x18] sm:$0xff]
    %v471 = vld [vmem:[%s465 + $0x20] sm:$0xf]
    %v472 = vld [vmem:[%s465 + $0x24] sm:$0xff]
    %v473 = vld [vmem:[%s465 + $0x2c] sm:$0xf]
    %v474 = vld [vmem:[%s465 + $0x30] sm:$0xff]
    %v475 = vld [vmem:[%s465 + $0x38] sm:$0xf]
    %v476 = vld [vmem:[%s465 + $0x3c] sm:$0xff]
    %v477 = vld [vmem:[%s465 + $0x44] sm:$0xf]
    %v478 = vld [vmem:[%s465 + $0x48] sm:$0xff]
    %v479 = vld [vmem:[%s465 + $0x50] sm:$0xf]
    %v480 = vld [vmem:[%s465 + $0x54] sm:$0xff]
    %v481 = vld [vmem:[%s465 + $0x5c] sm:$0xf]
    %v482 = vld [vmem:[%s465 + $0x60] sm:$0xff]
    %v483 = vld [vmem:[%s465 + $0x68] sm:$0xf]
    %v484 = vld [vmem:[%s465 + $0x6c] sm:$0xff]
    %v485 = vld [vmem:[%s465 + $0x74] sm:$0xf]
    %v486 = vld [vmem:[%s465 + $0x78] sm:$0xff]
    %v487 = vld [vmem:[%s465 + $0x80] sm:$0xf]
    %v488 = vld [vmem:[%s465 + $0x84] sm:$0xff]
    %v489 = vld [vmem:[%s465 + $0x8c] sm:$0xf]
    %v490 = vld [vmem:[%s465 + $0x90] sm:$0xff]
    %v491 = vld [vmem:[%s465 + $0x98] sm:$0xf]
    %v492 = vld [vmem:[%s465 + $0x9c] sm:$0xff]
    %v493 = vld [vmem:[%s465 + $0xa4] sm:$0xf]
    %v494 = vld [vmem:[%s465 + $0xa8] sm:$0xff]
    %v495 = vld [vmem:[%s465 + $0xb0] sm:$0xf]
    %v496 = vld [vmem:[%s465 + $0xb4] sm:$0xff]
    %v497 = vld [vmem:[%s465 + $0xbc] sm:$0xf]
    %s498 = scalar_lea.vmem %s4, 3
    %v499 = vld [vmem:[%s498] sm:$0x7]
    %v501 = vlaneseq
    %v502 = vshrl.u32 %v501, 7
    %v503 = vsub.s32 0, %v502
    %v504 = vrot.slane %v499, %v503
    %v505 = vlaneseq
    %v506 = vshrl.u32 %v505, 7
    %v507 = vsub.s32 1, %v506
    %v508 = vrot.slane %v499, %v507
    %v509 = vlaneseq
    %v510 = vshrl.u32 %v509, 7
    %v511 = vsub.s32 2, %v510
    %v512 = vrot.slane %v499, %v511
    %v548 = vunpack.c.l.b16 %v466
    %v549 = vunpack.c.h.b16 %v466
    %v550 = vunpack.c.l.b16 %v467
    %v551 = vunpack.c.l.b16 %v468
    %v552 = vunpack.c.h.b16 %v468
    %v553 = vunpack.c.l.b16 %v469
    %v554 = vunpack.c.l.b16 %v470
    %v555 = vunpack.c.h.b16 %v470
    %v556 = vunpack.c.l.b16 %v471
    %v557 = vunpack.c.l.b16 %v472
    %v558 = vunpack.c.h.b16 %v472
    %v559 = vunpack.c.l.b16 %v473
    %v560 = vunpack.c.l.b16 %v474
    %v561 = vunpack.c.h.b16 %v474
    %v562 = vunpack.c.l.b16 %v475
    %v563 = vunpack.c.l.b16 %v476
    %v564 = vunpack.c.h.b16 %v476
    %v565 = vunpack.c.l.b16 %v477
    %v566 = vunpack.c.l.b16 %v478
    %v567 = vunpack.c.h.b16 %v478
    %v568 = vunpack.c.l.b16 %v479
    %v569 = vunpack.c.l.b16 %v480
    %v570 = vunpack.c.h.b16 %v480
    %v571 = vunpack.c.l.b16 %v481
    %v572 = vunpack.c.l.b16 %v482
    %v573 = vunpack.c.h.b16 %v482
    %v574 = vunpack.c.l.b16 %v483
    %v575 = vunpack.c.l.b16 %v484
    %v576 = vunpack.c.h.b16 %v484
    %v577 = vunpack.c.l.b16 %v485
    %v578 = vunpack.c.l.b16 %v486
    %v579 = vunpack.c.h.b16 %v486
    %v580 = vunpack.c.l.b16 %v487
    %v581 = vunpack.c.l.b16 %v488
    %v582 = vunpack.c.h.b16 %v488
    %v583 = vunpack.c.l.b16 %v489
    %v584 = vunpack.c.l.b16 %v490
    %v585 = vunpack.c.h.b16 %v490
    %v586 = vunpack.c.l.b16 %v491
    %v587 = vunpack.c.l.b16 %v492
    %v588 = vunpack.c.h.b16 %v492
    %v589 = vunpack.c.l.b16 %v493
    %v590 = vunpack.c.l.b16 %v494
    %v591 = vunpack.c.h.b16 %v494
    %v592 = vunpack.c.l.b16 %v495
    %v593 = vunpack.c.l.b16 %v496
    %v594 = vunpack.c.h.b16 %v496
    %v595 = vunpack.c.l.b16 %v497
    %v596 = vpack.c.b16 %v551, %v548
    %v597 = vpack.c.b16 %v552, %v549
    %v598 = vpack.c.b16 %v553, %v550
    %v599 = vpack.c.b16 %v557, %v554
    %v600 = vpack.c.b16 %v558, %v555
    %v601 = vpack.c.b16 %v559, %v556
    %v602 = vpack.c.b16 %v563, %v560
    %v603 = vpack.c.b16 %v564, %v561
    %v604 = vpack.c.b16 %v565, %v562
    %v605 = vpack.c.b16 %v569, %v566
    %v606 = vpack.c.b16 %v570, %v567
    %v607 = vpack.c.b16 %v571, %v568
    %v608 = vpack.c.b16 %v575, %v572
    %v609 = vpack.c.b16 %v576, %v573
    %v610 = vpack.c.b16 %v577, %v574
    %v611 = vpack.c.b16 %v581, %v578
    %v612 = vpack.c.b16 %v582, %v579
    %v613 = vpack.c.b16 %v583, %v580
    %v614 = vpack.c.b16 %v587, %v584
    %v615 = vpack.c.b16 %v588, %v585
    %v616 = vpack.c.b16 %v589, %v586
    %v617 = vpack.c.b16 %v593, %v590
    %v618 = vpack.c.b16 %v594, %v591
    %v619 = vpack.c.b16 %v595, %v592
    %644 = vmatprep.subr.bf16.mxu0 %v597
    %645 = vmatpush1.bf16.msra.mxu0 %v596
    %646 = vmatprep.subr.bf16.mxu0 %v600
    %647 = vmatpush1.bf16.msra.mxu0 %v599
    %648 = vmatprep.subr.bf16.mxu0 %v603
    %649 = vmatpush1.bf16.msra.mxu0 %v602
    %650 = vmatprep.subr.bf16.mxu0 %v606
    %651 = vmatpush1.bf16.msra.mxu0 %v605
    %652 = vmatprep.subr.bf16.mxu0 %v609
    %653 = vmatpush1.bf16.msra.mxu0 %v608
    %654 = vmatprep.subr.bf16.mxu0 %v612
    %655 = vmatpush1.bf16.msra.mxu0 %v611
    %656 = vmatprep.subr.bf16.mxu0 %v615
    %657 = vmatpush1.bf16.msra.mxu0 %v614
    %658 = vmatprep.subr.bf16.mxu0 %v618
    %659 = vmatpush1.bf16.msra.mxu0 %v617
    %660 = vmatprep.subr.bf16.mxu0 0
    %661 = vmatpush1.bf16.msra.mxu0 0
    %662 = vmatprep.subr.bf16.mxu0 0
    %663 = vmatpush1.bf16.msra.mxu0 0
    %664 = vmatprep.subr.bf16.mxu0 0
    %665 = vmatpush1.bf16.msra.mxu0 0
    %666 = vmatprep.subr.bf16.mxu0 0
    %667 = vmatpush1.bf16.msra.mxu0 0
    %668 = vmatprep.subr.bf16.mxu0 0
    %669 = vmatpush1.bf16.msra.mxu0 0
    %670 = vmatprep.subr.bf16.mxu0 0
    %671 = vmatpush1.bf16.msra.mxu0 0
    %672 = vmatprep.subr.bf16.mxu0 0
    %673 = vmatpush1.bf16.msra.mxu0 0
    %674 = vmatprep.subr.bf16.mxu0 0
    %675 = vmatpush1.bf16.msra.mxu0 0
    %676 = vmatprep.mubr.bf16.mxu0 0
    %677 = vmatmul.mubr.bf16.gmra.mrb[0].mxu0 %v464
    %v678 = vpop.f32.mrb[0].mxu0
    %v679 = vadd.f32 %v504, %v678
    %v680 = vpop.f32.mrb[0].mxu0
    %v681 = vadd.f32 %v508, %v680
    %v682 = vpop.f32.mrb[0].mxu0
    %v683 = vpop.f32.mrb[0].mxu0
    %684 = vdwg.mxu0
    %685 = vmatprep.subr.bf16.mxu0 0
    %686 = vmatpush1.bf16.msra.mxu0 %v598
    %687 = vmatprep.subr.bf16.mxu0 0
    %688 = vmatpush1.bf16.msra.mxu0 %v601
    %689 = vmatprep.subr.bf16.mxu0 0
    %690 = vmatpush1.bf16.msra.mxu0 %v604
    %691 = vmatprep.subr.bf16.mxu0 0
    %692 = vmatpush1.bf16.msra.mxu0 %v607
    %693 = vmatprep.subr.bf16.mxu0 0
    %694 = vmatpush1.bf16.msra.mxu0 %v610
    %695 = vmatprep.subr.bf16.mxu0 0
    %696 = vmatpush1.bf16.msra.mxu0 %v613
    %697 = vmatprep.subr.bf16.mxu0 0
    %698 = vmatpush1.bf16.msra.mxu0 %v616
    %699 = vmatprep.subr.bf16.mxu0 0
    %700 = vmatpush1.bf16.msra.mxu0 %v619
    %701 = vmatprep.subr.bf16.mxu0 0
    %702 = vmatpush1.bf16.msra.mxu0 0
    %703 = vmatprep.subr.bf16.mxu0 0
    %704 = vmatpush1.bf16.msra.mxu0 0
    %705 = vmatprep.subr.bf16.mxu0 0
    %706 = vmatpush1.bf16.msra.mxu0 0
    %707 = vmatprep.subr.bf16.mxu0 0
    %708 = vmatpush1.bf16.msra.mxu0 0
    %709 = vmatprep.subr.bf16.mxu0 0
    %710 = vmatpush1.bf16.msra.mxu0 0
    %711 = vmatprep.subr.bf16.mxu0 0
    %712 = vmatpush1.bf16.msra.mxu0 0
    %713 = vmatprep.subr.bf16.mxu0 0
    %714 = vmatpush1.bf16.msra.mxu0 0
    %715 = vmatprep.subr.bf16.mxu0 0
    %716 = vmatpush1.bf16.msra.mxu0 0
    %717 = vmatprep.mubr.bf16.mxu0 0
    %718 = vmatmul.mubr.bf16.gmra.mrb[0].mxu0 %v464
    %v719 = vpop.f32.mrb[0].mxu0
    %v720 = vadd.f32 %v512, %v719
    %v721 = vpop.f32.mrb[0].mxu0
    %v722 = vpop.f32.mrb[0].mxu0
    %v723 = vpop.f32.mrb[0].mxu0
    %724 = vdwg.mxu0
    %v725 = vxor.u32 %v679, 2147483648
    %v726 = vmul.f32 %v725, 1.442695
    %v727 = vpow.pop %v726
    %v728 = vadd.f32 %v727, 1.0
    %v729 = vrcp.pop %v728
    %v730 = vmul.f32 1.0, %v729
    %v731 = vmax.f32 %v681, 0.0
    %v732 = vsub.f32 %v731, %v720
    %v733 = vmul.f32 %v730, %v732
    %v734 = vadd.f32 %v720, %v733
    %v735 = vpack.c.bf16 %v734, %v734
    %s736 = scalar_lea.vmem [#allocation7], 384
    %v737 = vld [vmem:[%s736] sm:$0xff]
    %v738 = vld [vmem:[%s736 + $0x8] sm:$0xf]
    %v739 = vld [vmem:[%s736 + $0xc] sm:$0xff]
    %v740 = vld [vmem:[%s736 + $0x14] sm:$0xf]
    %v741 = vld [vmem:[%s736 + $0x18] sm:$0xff]
    %v742 = vld [vmem:[%s736 + $0x20] sm:$0xf]
    %v743 = vld [vmem:[%s736 + $0x24] sm:$0xff]
    %v744 = vld [vmem:[%s736 + $0x2c] sm:$0xf]
    %v745 = vld [vmem:[%s736 + $0x30] sm:$0xff]
    %v746 = vld [vmem:[%s736 + $0x38] sm:$0xf]
    %v747 = vld [vmem:[%s736 + $0x3c] sm:$0xff]
    %v748 = vld [vmem:[%s736 + $0x44] sm:$0xf]
    %v749 = vld [vmem:[%s736 + $0x48] sm:$0xff]
    %v750 = vld [vmem:[%s736 + $0x50] sm:$0xf]
    %v751 = vld [vmem:[%s736 + $0x54] sm:$0xff]
    %v752 = vld [vmem:[%s736 + $0x5c] sm:$0xf]
    %v753 = vld [vmem:[%s736 + $0x60] sm:$0xff]
    %v754 = vld [vmem:[%s736 + $0x68] sm:$0xf]
    %v755 = vld [vmem:[%s736 + $0x6c] sm:$0xff]
    %v756 = vld [vmem:[%s736 + $0x74] sm:$0xf]
    %v757 = vld [vmem:[%s736 + $0x78] sm:$0xff]
    %v758 = vld [vmem:[%s736 + $0x80] sm:$0xf]
    %v759 = vld [vmem:[%s736 + $0x84] sm:$0xff]
    %v760 = vld [vmem:[%s736 + $0x8c] sm:$0xf]
    %v761 = vld [vmem:[%s736 + $0x90] sm:$0xff]
    %v762 = vld [vmem:[%s736 + $0x98] sm:$0xf]
    %v763 = vld [vmem:[%s736 + $0x9c] sm:$0xff]
    %v764 = vld [vmem:[%s736 + $0xa4] sm:$0xf]
    %v765 = vld [vmem:[%s736 + $0xa8] sm:$0xff]
    %v766 = vld [vmem:[%s736 + $0xb0] sm:$0xf]
    %v767 = vld [vmem:[%s736 + $0xb4] sm:$0xff]
    %v768 = vld [vmem:[%s736 + $0xbc] sm:$0xf]
    %s769 = scalar_lea.vmem %s4, 6
    %v770 = vld [vmem:[%s769] sm:$0x7]
    %v772 = vlaneseq
    %v773 = vshrl.u32 %v772, 7
    %v774 = vsub.s32 0, %v773
    %v775 = vrot.slane %v770, %v774
    %v776 = vlaneseq
    %v777 = vshrl.u32 %v776, 7
    %v778 = vsub.s32 1, %v777
    %v779 = vrot.slane %v770, %v778
    %v780 = vlaneseq
    %v781 = vshrl.u32 %v780, 7
    %v782 = vsub.s32 2, %v781
    %v783 = vrot.slane %v770, %v782
    %v819 = vunpack.c.l.b16 %v737
    %v820 = vunpack.c.h.b16 %v737
    %v821 = vunpack.c.l.b16 %v738
    %v822 = vunpack.c.l.b16 %v739
    %v823 = vunpack.c.h.b16 %v739
    %v824 = vunpack.c.l.b16 %v740
    %v825 = vunpack.c.l.b16 %v741
    %v826 = vunpack.c.h.b16 %v741
    %v827 = vunpack.c.l.b16 %v742
    %v828 = vunpack.c.l.b16 %v743
    %v829 = vunpack.c.h.b16 %v743
    %v830 = vunpack.c.l.b16 %v744
    %v831 = vunpack.c.l.b16 %v745
    %v832 = vunpack.c.h.b16 %v745
    %v833 = vunpack.c.l.b16 %v746
    %v834 = vunpack.c.l.b16 %v747
    %v835 = vunpack.c.h.b16 %v747
    %v836 = vunpack.c.l.b16 %v748
    %v837 = vunpack.c.l.b16 %v749
    %v838 = vunpack.c.h.b16 %v749
    %v839 = vunpack.c.l.b16 %v750
    %v840 = vunpack.c.l.b16 %v751
    %v841 = vunpack.c.h.b16 %v751
    %v842 = vunpack.c.l.b16 %v752
    %v843 = vunpack.c.l.b16 %v753
    %v844 = vunpack.c.h.b16 %v753
    %v845 = vunpack.c.l.b16 %v754
    %v846 = vunpack.c.l.b16 %v755
    %v847 = vunpack.c.h.b16 %v755
    %v848 = vunpack.c.l.b16 %v756
    %v849 = vunpack.c.l.b16 %v757
    %v850 = vunpack.c.h.b16 %v757
    %v851 = vunpack.c.l.b16 %v758
    %v852 = vunpack.c.l.b16 %v759
    %v853 = vunpack.c.h.b16 %v759
    %v854 = vunpack.c.l.b16 %v760
    %v855 = vunpack.c.l.b16 %v761
    %v856 = vunpack.c.h.b16 %v761
    %v857 = vunpack.c.l.b16 %v762
    %v858 = vunpack.c.l.b16 %v763
    %v859 = vunpack.c.h.b16 %v763
    %v860 = vunpack.c.l.b16 %v764
    %v861 = vunpack.c.l.b16 %v765
    %v862 = vunpack.c.h.b16 %v765
    %v863 = vunpack.c.l.b16 %v766
    %v864 = vunpack.c.l.b16 %v767
    %v865 = vunpack.c.h.b16 %v767
    %v866 = vunpack.c.l.b16 %v768
    %v867 = vpack.c.b16 %v822, %v819
    %v868 = vpack.c.b16 %v823, %v820
    %v869 = vpack.c.b16 %v824, %v821
    %v870 = vpack.c.b16 %v828, %v825
    %v871 = vpack.c.b16 %v829, %v826
    %v872 = vpack.c.b16 %v830, %v827
    %v873 = vpack.c.b16 %v834, %v831
    %v874 = vpack.c.b16 %v835, %v832
    %v875 = vpack.c.b16 %v836, %v833
    %v876 = vpack.c.b16 %v840, %v837
    %v877 = vpack.c.b16 %v841, %v838
    %v878 = vpack.c.b16 %v842, %v839
    %v879 = vpack.c.b16 %v846, %v843
    %v880 = vpack.c.b16 %v847, %v844
    %v881 = vpack.c.b16 %v848, %v845
    %v882 = vpack.c.b16 %v852, %v849
    %v883 = vpack.c.b16 %v853, %v850
    %v884 = vpack.c.b16 %v854, %v851
    %v885 = vpack.c.b16 %v858, %v855
    %v886 = vpack.c.b16 %v859, %v856
    %v887 = vpack.c.b16 %v860, %v857
    %v888 = vpack.c.b16 %v864, %v861
    %v889 = vpack.c.b16 %v865, %v862
    %v890 = vpack.c.b16 %v866, %v863
    %915 = vmatprep.subr.bf16.mxu0 %v868
    %916 = vmatpush1.bf16.msra.mxu0 %v867
    %917 = vmatprep.subr.bf16.mxu0 %v871
    %918 = vmatpush1.bf16.msra.mxu0 %v870
    %919 = vmatprep.subr.bf16.mxu0 %v874
    %920 = vmatpush1.bf16.msra.mxu0 %v873
    %921 = vmatprep.subr.bf16.mxu0 %v877
    %922 = vmatpush1.bf16.msra.mxu0 %v876
    %923 = vmatprep.subr.bf16.mxu0 %v880
    %924 = vmatpush1.bf16.msra.mxu0 %v879
    %925 = vmatprep.subr.bf16.mxu0 %v883
    %926 = vmatpush1.bf16.msra.mxu0 %v882
    %927 = vmatprep.subr.bf16.mxu0 %v886
    %928 = vmatpush1.bf16.msra.mxu0 %v885
    %929 = vmatprep.subr.bf16.mxu0 %v889
    %930 = vmatpush1.bf16.msra.mxu0 %v888
    %931 = vmatprep.subr.bf16.mxu0 0
    %932 = vmatpush1.bf16.msra.mxu0 0
    %933 = vmatprep.subr.bf16.mxu0 0
    %934 = vmatpush1.bf16.msra.mxu0 0
    %935 = vmatprep.subr.bf16.mxu0 0
    %936 = vmatpush1.bf16.msra.mxu0 0
    %937 = vmatprep.subr.bf16.mxu0 0
    %938 = vmatpush1.bf16.msra.mxu0 0
    %939 = vmatprep.subr.bf16.mxu0 0
    %940 = vmatpush1.bf16.msra.mxu0 0
    %941 = vmatprep.subr.bf16.mxu0 0
    %942 = vmatpush1.bf16.msra.mxu0 0
    %943 = vmatprep.subr.bf16.mxu0 0
    %944 = vmatpush1.bf16.msra.mxu0 0
    %945 = vmatprep.subr.bf16.mxu0 0
    %946 = vmatpush1.bf16.msra.mxu0 0
    %947 = vmatprep.mubr.bf16.mxu0 0
    %948 = vmatmul.mubr.bf16.gmra.mrb[0].mxu0 %v735
    %v949 = vpop.f32.mrb[0].mxu0
    %v950 = vadd.f32 %v775, %v949
    %v951 = vpop.f32.mrb[0].mxu0
    %v952 = vadd.f32 %v779, %v951
    %v953 = vpop.f32.mrb[0].mxu0
    %v954 = vpop.f32.mrb[0].mxu0
    %955 = vdwg.mxu0
    %956 = vmatprep.subr.bf16.mxu0 0
    %957 = vmatpush1.bf16.msra.mxu0 %v869
    %958 = vmatprep.subr.bf16.mxu0 0
    %959 = vmatpush1.bf16.msra.mxu0 %v872
    %960 = vmatprep.subr.bf16.mxu0 0
    %961 = vmatpush1.bf16.msra.mxu0 %v875
    %962 = vmatprep.subr.bf16.mxu0 0
    %963 = vmatpush1.bf16.msra.mxu0 %v878
    %964 = vmatprep.subr.bf16.mxu0 0
    %965 = vmatpush1.bf16.msra.mxu0 %v881
    %966 = vmatprep.subr.bf16.mxu0 0
    %967 = vmatpush1.bf16.msra.mxu0 %v884
    %968 = vmatprep.subr.bf16.mxu0 0
    %969 = vmatpush1.bf16.msra.mxu0 %v887
    %970 = vmatprep.subr.bf16.mxu0 0
    %971 = vmatpush1.bf16.msra.mxu0 %v890
    %972 = vmatprep.subr.bf16.mxu0 0
    %973 = vmatpush1.bf16.msra.mxu0 0
    %974 = vmatprep.subr.bf16.mxu0 0
    %975 = vmatpush1.bf16.msra.mxu0 0
    %976 = vmatprep.subr.bf16.mxu0 0
    %977 = vmatpush1.bf16.msra.mxu0 0
    %978 = vmatprep.subr.bf16.mxu0 0
    %979 = vmatpush1.bf16.msra.mxu0 0
    %980 = vmatprep.subr.bf16.mxu0 0
    %981 = vmatpush1.bf16.msra.mxu0 0
    %982 = vmatprep.subr.bf16.mxu0 0
    %983 = vmatpush1.bf16.msra.mxu0 0
    %984 = vmatprep.subr.bf16.mxu0 0
    %985 = vmatpush1.bf16.msra.mxu0 0
    %986 = vmatprep.subr.bf16.mxu0 0
    %987 = vmatpush1.bf16.msra.mxu0 0
    %988 = vmatprep.mubr.bf16.mxu0 0
    %989 = vmatmul.mubr.bf16.gmra.mrb[0].mxu0 %v735
    %v990 = vpop.f32.mrb[0].mxu0
    %v991 = vadd.f32 %v783, %v990
    %v992 = vpop.f32.mrb[0].mxu0
    %v993 = vpop.f32.mrb[0].mxu0
    %v994 = vpop.f32.mrb[0].mxu0
    %995 = vdwg.mxu0
    %v996 = vxor.u32 %v950, 2147483648
    %v997 = vmul.f32 %v996, 1.442695
    %v998 = vpow.pop %v997
    %v999 = vadd.f32 %v998, 1.0
    %v1000 = vrcp.pop %v999
    %v1001 = vmul.f32 1.0, %v1000
    %v1002 = vmax.f32 %v952, 0.0
    %v1003 = vsub.f32 %v1002, %v991
    %v1004 = vmul.f32 %v1001, %v1003
    %v1005 = vadd.f32 %v991, %v1004
    %v1006 = vpack.c.bf16 %v1005, %v1005
    %v1007 = vld [vmem:[#allocation8] sm:$0xf]
    %v1008 = vld [vmem:[#allocation8 + $0x4] sm:$0xf]
    %v1009 = vld [vmem:[#allocation8 + $0x8] sm:$0xf]
    %v1010 = vld [vmem:[#allocation8 + $0xc] sm:$0xf]
    %v1011 = vld [vmem:[#allocation8 + $0x10] sm:$0xf]
    %v1012 = vld [vmem:[#allocation8 + $0x14] sm:$0xf]
    %v1013 = vld [vmem:[#allocation8 + $0x18] sm:$0xf]
    %v1014 = vld [vmem:[#allocation8 + $0x1c] sm:$0xf]
    %v1015 = vld [vmem:[#allocation8 + $0x20] sm:$0xf]
    %v1016 = vld [vmem:[#allocation8 + $0x24] sm:$0xf]
    %v1017 = vld [vmem:[#allocation8 + $0x28] sm:$0xf]
    %v1018 = vld [vmem:[#allocation8 + $0x2c] sm:$0xf]
    %v1019 = vld [vmem:[#allocation8 + $0x30] sm:$0xf]
    %v1020 = vld [vmem:[#allocation8 + $0x34] sm:$0xf]
    %v1021 = vld [vmem:[#allocation8 + $0x38] sm:$0xf]
    %v1022 = vld [vmem:[#allocation8 + $0x3c] sm:$0xf]
    %v1023 = vld [vmem:[%s6] sm:$0x1]
    %v1025 = vlaneseq
    %v1026 = vshrl.u32 %v1025, 7
    %v1027 = vsub.s32 0, %v1026
    %v1028 = vrot.slane %v1023, %v1027
    %v1046 = vunpack.c.l.b16 %v1007
    %v1047 = vunpack.c.l.b16 %v1008
    %v1048 = vunpack.c.l.b16 %v1009
    %v1049 = vunpack.c.l.b16 %v1010
    %v1050 = vunpack.c.l.b16 %v1011
    %v1051 = vunpack.c.l.b16 %v1012
    %v1052 = vunpack.c.l.b16 %v1013
    %v1053 = vunpack.c.l.b16 %v1014
    %v1054 = vunpack.c.l.b16 %v1015
    %v1055 = vunpack.c.l.b16 %v1016
    %v1056 = vunpack.c.l.b16 %v1017
    %v1057 = vunpack.c.l.b16 %v1018
    %v1058 = vunpack.c.l.b16 %v1019
    %v1059 = vunpack.c.l.b16 %v1020
    %v1060 = vunpack.c.l.b16 %v1021
    %v1061 = vunpack.c.l.b16 %v1022
    %v1062 = vpack.c.b16 %v1047, %v1046
    %v1063 = vpack.c.b16 %v1049, %v1048
    %v1064 = vpack.c.b16 %v1051, %v1050
    %v1065 = vpack.c.b16 %v1053, %v1052
    %v1066 = vpack.c.b16 %v1055, %v1054
    %v1067 = vpack.c.b16 %v1057, %v1056
    %v1068 = vpack.c.b16 %v1059, %v1058
    %v1069 = vpack.c.b16 %v1061, %v1060
    %1078 = vmatprep.subr.bf16.mxu0 0
    %1079 = vmatpush1.bf16.msra.mxu0 %v1062
    %1080 = vmatprep.subr.bf16.mxu0 0
    %1081 = vmatpush1.bf16.msra.mxu0 %v1063
    %1082 = vmatprep.subr.bf16.mxu0 0
    %1083 = vmatpush1.bf16.msra.mxu0 %v1064
    %1084 = vmatprep.subr.bf16.mxu0 0
    %1085 = vmatpush1.bf16.msra.mxu0 %v1065
    %1086 = vmatprep.subr.bf16.mxu0 0
    %1087 = vmatpush1.bf16.msra.mxu0 %v1066
    %1088 = vmatprep.subr.bf16.mxu0 0
    %1089 = vmatpush1.bf16.msra.mxu0 %v1067
    %1090 = vmatprep.subr.bf16.mxu0 0
    %1091 = vmatpush1.bf16.msra.mxu0 %v1068
    %1092 = vmatprep.subr.bf16.mxu0 0
    %1093 = vmatpush1.bf16.msra.mxu0 %v1069
    %1094 = vmatprep.subr.bf16.mxu0 0
    %1095 = vmatpush1.bf16.msra.mxu0 0
    %1096 = vmatprep.subr.bf16.mxu0 0
    %1097 = vmatpush1.bf16.msra.mxu0 0
    %1098 = vmatprep.subr.bf16.mxu0 0
    %1099 = vmatpush1.bf16.msra.mxu0 0
    %1100 = vmatprep.subr.bf16.mxu0 0
    %1101 = vmatpush1.bf16.msra.mxu0 0
    %1102 = vmatprep.subr.bf16.mxu0 0
    %1103 = vmatpush1.bf16.msra.mxu0 0
    %1104 = vmatprep.subr.bf16.mxu0 0
    %1105 = vmatpush1.bf16.msra.mxu0 0
    %1106 = vmatprep.subr.bf16.mxu0 0
    %1107 = vmatpush1.bf16.msra.mxu0 0
    %1108 = vmatprep.subr.bf16.mxu0 0
    %1109 = vmatpush1.bf16.msra.mxu0 0
    %1110 = vmatprep.mubr.bf16.mxu0 0
    %1111 = vmatmul.mubr.bf16.gmra.mrb[0].mxu0 %v1006
    %v1112 = vpop.f32.mrb[0].mxu0
    %v1113 = vadd.f32 %v1028, %v1112
    %v1114 = vpop.f32.mrb[0].mxu0
    %v1115 = vpop.f32.mrb[0].mxu0
    %v1116 = vpop.f32.mrb[0].mxu0
    %1117 = vdwg.mxu0
    %v1118 = vlaneseq
    %v1119 = vand.u32 %v1118, 127
    %vm1120 = vcmp.lt.s32.totalorder %v1119, 10
    %v1121 = vsel %vm1120, %v1113, -1e+30
    %1122 = vmax.xlane.f32.xlu0 %v1121
    %v1123 = vpop.xlane.xlu0 %1122
    %v1124 = vsub.f32 %v1121, %v1123
    %v1125 = vmul.f32 %v1124, 1.442695
    %v1126 = vpow.pop %v1125
    %1127 = vadd.xlane.f32.xlu0 %v1126
    %v1128 = vpop.xlane.xlu0 %1127
    %v1129 = vrcp.pop %v1128
    %v1130 = vmul.f32 %v1126, %v1129
    %1131 = vst [vmem:[#allocation10] sm:$0xff] %v1130
    // Predicated region
    $region46: #{tpu_custom_call.1} parent=1 // pred_check
      _
    $region47: #{tpu_custom_call.1} parent=1 // pred_check_branch
      %1133 = sbr.rel (0) target = $region49
    $region48: #{tpu_custom_call.1} parent=1 // pred_region
      %s1135 = ssub.s32 128, 128
      %1136 = vsyncadd [#allocation4], %s1135
      %s1138 = sshll.u32 [#allocation10], 4
      %s1139 = int_to_ptr.vmem [resolvable:$true] %s1138
      %1141 = dma.vmem_to_hbm [thread:$0]  %s1139, 128, %s7, [#allocation4]
    $region49: #{tpu_custom_call.1} parent=1 // pred_fallthru
      _
    // Predicated region
    $region50: #{tpu_custom_call.1} parent=1 // pred_check
      _
    $region51: #{tpu_custom_call.1} parent=1 // pred_check_branch
      %1143 = sbr.rel (0) target = $region53
    $region52: #{tpu_custom_call.1} parent=1 // pred_region
      %1144 = dma.done [#allocation4], 128
    $region53: #{tpu_custom_call.1} parent=1 // pred_fallthru
      _
    %1145 = vsyncpa [#allocation3], 1
    %1146 = vsyncpa [#allocation6], 1
    %1147 = vsyncpa [#allocation9], 1
    %1148 = vsyncpa [#allocation4], 1

</llo_original>
